<compile_context>
chip_gen: v6e
topology: v6e:2x2x1
jax: 0.10.0
libtpu: 0.0.40
codegen_flags: <defaults>
</compile_context>

<pallas_src>
import jax
import jax.numpy as jnp
from jax import lax
from jax.experimental import pallas as pl
from jax.experimental.pallas import tpu as pltpu

EPS = 1e-5  # PyTorch BatchNorm2d default


def resblock_forward(x, p):
    """x: NHWC float32.  p: parameter dict (see make_params)."""
    N, H, W, C = x.shape
    WC = W * C
    S = H + 8                    # 8-sublane-aligned per-image stride (pad + slack)
    PAD_ROWS = N * S + 8         # covers last image's bottom pad, multiple of 8
    n_elems = float(N * H * W)

    # ---- wrapper-side layout plumbing (lane-dense, done once per call) ----
    x2d = x.reshape(N * H, WC)                                    # free reshape

    # banded conv weights: wbig[ky][p*C+ci, x*C+co] = w[ky, p-x+1, ci, co]
    # (the kx taps AND the horizontal zero padding are folded into the band)
    band = jnp.stack([jnp.eye(W, k=1), jnp.eye(W), jnp.eye(W, k=-1)]
                     ).astype(jnp.float32)                        # (3, W, W)

    def make_wbig(w):                                             # w: (3,3,C,C) HWIO
        m = jnp.einsum("kpx,akio->apixo", band, w)                # (3, W, C, W, C)
        return m.reshape(3, WC, WC)

    wb1 = make_wbig(p["w1"])
    wb2 = make_wbig(p["w2"])

    # per-channel BN params tiled across the W lane groups -> (1, W*C)
    g1w, bt1w = jnp.tile(p["g1"], (1, W)), jnp.tile(p["bt1"], (1, W))
    g2w, bt2w = jnp.tile(p["g2"], (1, W)), jnp.tile(p["bt2"], (1, W))

    # Smat: (WC, WC) sums each channel over its W lane copies, broadcast back
    # Sc  : (WC, C)  per-lane -> per-channel reduction;  ScT broadcasts back
    eyeC = jnp.eye(C, dtype=jnp.float32)
    Smat = jnp.kron(jnp.ones((W, W), jnp.float32), eyeC)
    Sc = jnp.tile(eyeC, (W, 1))
    ScT = Sc.T

    inv_n = 1.0 / n_elems
    inv_h = 1.0 / H
    inv_w = 1.0 / W

    # ---- the fused kernel ----
    def kernel(x_ref, wb1_ref, g1_ref, bt1_ref, wb2_ref, g2_ref, bt2_ref,
               sw1_ref, sb1_ref, sw2_ref, sb2_ref,
               s_ref, sc_ref, sct_ref, o_ref, p_ref):

        def sig(z):                       # sigmoid: 1 exp + 1 reciprocal (EUP)
            return pl.reciprocal(1.0 + jnp.exp(-z), approx=False)

        def conv_taps(wb_ref):
            # ONE (PAD_ROWS, WC) @ (WC, WC) matmul per vertical tap over the
            # whole padded buffer; the row shifts are applied on the results.
            p_all = p_ref[...]
            return [jnp.dot(p_all, wb_ref[ky],
                            preferred_element_type=jnp.float32)
                    for ky in range(3)]

        def bn_scale_shift(s, ss, g_ref, bt_ref):
            # per-lane sums -> per-channel stats broadcast back over all lanes
            # via one tiny (2, WC) @ (WC, WC) matmul.
            stats = jnp.dot(jnp.concatenate([s, ss], axis=0), s_ref[...],
                            preferred_element_type=jnp.float32) * inv_n
            mean = stats[0:1, :]
            var = stats[1:2, :] - mean * mean
            scale = lax.rsqrt(var + EPS) * g_ref[...]
            shift = bt_ref[...] - mean * scale
            return scale, shift

        # zero the pad / slack rows ONCE, with 8-row-aligned block stores.
        zblk = jnp.zeros((8, WC), jnp.float32)
        for n in range(N + 1):
            p_ref[n * S:n * S + 8, :] = zblk

        # fill interior rows with the input (aligned (H, WC) stores).
        for n in range(N):
            b = 8 + n * S
            p_ref[b:b + H, :] = x_ref[n * H:(n + 1) * H, :]

        # ---------------- conv1 -> BN1 -> Mish (in place in p_ref) ----------
        r = conv_taps(wb1_ref)
        s = jnp.zeros((1, WC), jnp.float32)
        ss = jnp.zeros((1, WC), jnp.float32)
        for n in range(N):
            b = 8 + n * S
            hn = (r[0][b - 1:b - 1 + H, :] + r[1][b:b + H, :]
                  + r[2][b + 1:b + 1 + H, :])
            s = s + jnp.sum(hn, axis=0, keepdims=True)
            ss = ss + jnp.sum(hn * hn, axis=0, keepdims=True)
            p_ref[b:b + H, :] = hn                 # stash conv1 raw output
        scale1, shift1 = bn_scale_shift(s, ss, g1_ref, bt1_ref)
        for n in range(N):
            b = 8 + n * S
            hn = p_ref[b:b + H, :] * scale1 + shift1
            # Mish: x * tanh(softplus(x)) = x * (1 - 2/((1+e^x)^2 + 1))
            t = 1.0 + jnp.exp(hn)
            p_ref[b:b + H, :] = hn * (1.0 - 2.0 * pl.reciprocal(
                t * t + 1.0, approx=False))

        # ---------------- conv2 -> BN2 stats (+ per-image SE sums) ----------
        r = conv_taps(wb2_ref)
        s = jnp.zeros((1, WC), jnp.float32)
        ss = jnp.zeros((1, WC), jnp.float32)
        per_img_sum = []
        for n in range(N):
            b = 8 + n * S
            hn = (r[0][b - 1:b - 1 + H, :] + r[1][b:b + H, :]
                  + r[2][b + 1:b + 1 + H, :])
            sn = jnp.sum(hn, axis=0, keepdims=True)
            per_img_sum.append(sn)
            s = s + sn
            ss = ss + jnp.sum(hn * hn, axis=0, keepdims=True)
            p_ref[b:b + H, :] = hn                 # stash conv2 raw output
        scale2, shift2 = bn_scale_shift(s, ss, g2_ref, bt2_ref)

        # ------------- BN2 -> SE gate -> residual -> SiLU, per image --------
        for n in range(N):
            b = 8 + n * S
            # SE squeeze from the per-image per-lane sums: BN applied in lane
            # space, then averaged over the W lane copies of each channel.
            pooled_lane = per_img_sum[n] * inv_h * scale2 + shift2   # (1, WC)
            pooled_c = jnp.dot(pooled_lane, sc_ref[...],
                               preferred_element_type=jnp.float32) * inv_w
            z = jnp.dot(pooled_c, sw1_ref[...],
                        preferred_element_type=jnp.float32) + sb1_ref[...]
            z = jnp.maximum(z, 0.0)                                   # ReLU
            z = jnp.dot(z, sw2_ref[...],
                        preferred_element_type=jnp.float32) + sb2_ref[...]
            gate_w = jnp.dot(sig(z), sct_ref[...],
                             preferred_element_type=jnp.float32)      # (1, WC)

            hn = p_ref[b:b + H, :] * scale2 + shift2                  # BN2
            y = x_ref[n * H:(n + 1) * H, :] + hn * gate_w             # residual
            o_ref[n * H:(n + 1) * H, :] = y * sig(y)                  # SiLU

    vmem = pl.BlockSpec(memory_space=pltpu.MemorySpace.VMEM)
    args = (x2d, wb1, g1w, bt1w, wb2, g2w, bt2w,
            p["sw1"], p["sb1"], p["sw2"], p["sb2"], Smat, Sc, ScT)

    out2d = pl.pallas_call(
        kernel,
        out_shape=jax.ShapeDtypeStruct((N * H, WC), jnp.float32),
        in_specs=[vmem] * len(args),
        out_specs=vmem,
        scratch_shapes=[pltpu.VMEM((PAD_ROWS, WC), jnp.float32)],
        compiler_params=pltpu.CompilerParams(
            vmem_limit_bytes=32 * 1024 * 1024),
    )(*args)

    return out2d.reshape(N, H, W, C)


def resblock_ref(x, p):
    """Pure-JAX reference (same math as the PyTorch module, NHWC)."""
    def conv(h, w, b):
        y = lax.conv_general_dilated(
            h, w, (1, 1), "SAME", dimension_numbers=("NHWC", "HWIO", "NHWC"))
        return y + b.reshape(1, 1, 1, -1)

    def bn(h, g, bt):
        mean = h.mean(axis=(0, 1, 2), keepdims=True)
        var = ((h - mean) ** 2).mean(axis=(0, 1, 2), keepdims=True)
        return (h - mean) * lax.rsqrt(var + EPS) * g.reshape(1, 1, 1, -1) \
            + bt.reshape(1, 1, 1, -1)

    h = conv(x, p["w1"], p["b1"]); h = bn(h, p["g1"], p["bt1"])
    h = h * jnp.tanh(jnp.log(1.0 + jnp.exp(h)))                    # Mish
    h = conv(h, p["w2"], p["b2"]); h = bn(h, p["g2"], p["bt2"])
    s = h.mean(axis=(1, 2))
    s = jnp.maximum(s @ p["sw1"] + p["sb1"], 0.0)
    s = 1.0 / (1.0 + jnp.exp(-(s @ p["sw2"] + p["sb2"])))
    out = h * s[:, None, None, :]
    y = x + out
    return y * (1.0 / (1.0 + jnp.exp(-y)))


def make_params(key, C, reduction=4):
    Cr = max(C // reduction, 1)
    ks = jax.random.split(key, 8)
    f32 = jnp.float32
    return {
        "w1": (jax.random.normal(ks[0], (3, 3, C, C), f32) * 0.1),
        "b1": (jax.random.normal(ks[1], (1, C), f32) * 0.05),
        "g1": jnp.ones((1, C), f32),
        "bt1": jnp.zeros((1, C), f32),
        "w2": (jax.random.normal(ks[2], (3, 3, C, C), f32) * 0.1),
        "b2": (jax.random.normal(ks[3], (1, C), f32) * 0.05),
        "g2": jnp.ones((1, C), f32),
        "bt2": jnp.zeros((1, C), f32),
        "sw1": (jax.random.normal(ks[4], (C, Cr), f32) * 0.2),
        "sb1": (jax.random.normal(ks[5], (1, Cr), f32) * 0.05),
        "sw2": (jax.random.normal(ks[6], (Cr, C), f32) * 0.2),
        "sb2": (jax.random.normal(ks[7], (1, C), f32) * 0.05),
    }


if __name__ == "__main__":
    key = jax.random.PRNGKey(0)
    kx, kp = jax.random.split(key)

    N, C, H, W = 2, 8, 16, 16            # NHWC here == PyTorch NCHW (2, 8, 16, 16)
    x = jax.random.normal(kx, (N, H, W, C), jnp.float32)
    params = make_params(kp, C)

    y = jax.block_until_ready(resblock_forward(x, params))

    y_ref = resblock_ref(x, params)
    err = float(jnp.max(jnp.abs(y - y_ref)))
    assert err < 1e-3, f"mismatch vs reference: {err}"

    print("KERNEL_OK")
</pallas_src>

<mosaic_0001>
module attributes {stable_mosaic.version = 11 : i64} {
  func.func @kernel(%arg0: memref<32x128xf32, #tpu.memory_space<vmem>>, %arg1: memref<3x128x128xf32, #tpu.memory_space<vmem>>, %arg2: memref<1x128xf32, #tpu.memory_space<vmem>>, %arg3: memref<1x128xf32, #tpu.memory_space<vmem>>, %arg4: memref<3x128x128xf32, #tpu.memory_space<vmem>>, %arg5: memref<1x128xf32, #tpu.memory_space<vmem>>, %arg6: memref<1x128xf32, #tpu.memory_space<vmem>>, %arg7: memref<8x2xf32, #tpu.memory_space<vmem>>, %arg8: memref<1x2xf32, #tpu.memory_space<vmem>>, %arg9: memref<2x8xf32, #tpu.memory_space<vmem>>, %arg10: memref<1x8xf32, #tpu.memory_space<vmem>>, %arg11: memref<128x128xf32, #tpu.memory_space<vmem>>, %arg12: memref<128x8xf32, #tpu.memory_space<vmem>>, %arg13: memref<8x128xf32, #tpu.memory_space<vmem>>, %arg14: memref<32x128xf32, #tpu.memory_space<vmem>>, %arg15: memref<56x128xf32, #tpu.memory_space<vmem>>) attributes {dimension_semantics = [], scalar_prefetch = 0 : i64, scratch_operands = 1 : i64, tpu.core_type = #tpu.core_type<tc>} {
    %cst = arith.constant 0.000000e+00 : f32
    %0 = vector.broadcast %cst : f32 to vector<8x128xf32>
    %c0 = arith.constant 0 : index
    %c0_0 = arith.constant 0 : index
    %1 = vector.load %arg15[%c0, %c0_0] : memref<56x128xf32, #tpu.memory_space<vmem>>, vector<8x128xf32>
    tpu.vector_store %arg15[%c0, %c0_0], %0 {strides = array<i32>} : memref<56x128xf32, #tpu.memory_space<vmem>>, vector<8x128xf32>,
    %c24 = arith.constant 24 : index
    %c0_1 = arith.constant 0 : index
    %2 = vector.load %arg15[%c24, %c0_1] : memref<56x128xf32, #tpu.memory_space<vmem>>, vector<8x128xf32>
    tpu.vector_store %arg15[%c24, %c0_1], %0 {strides = array<i32>} : memref<56x128xf32, #tpu.memory_space<vmem>>, vector<8x128xf32>,
    %c48 = arith.constant 48 : index
    %c0_2 = arith.constant 0 : index
    %3 = vector.load %arg15[%c48, %c0_2] : memref<56x128xf32, #tpu.memory_space<vmem>>, vector<8x128xf32>
    tpu.vector_store %arg15[%c48, %c0_2], %0 {strides = array<i32>} : memref<56x128xf32, #tpu.memory_space<vmem>>, vector<8x128xf32>,
    %c0_3 = arith.constant 0 : index
    %c0_4 = arith.constant 0 : index
    %4 = vector.load %arg0[%c0_3, %c0_4] : memref<32x128xf32, #tpu.memory_space<vmem>>, vector<16x128xf32>
    %c8 = arith.constant 8 : index
    %c0_5 = arith.constant 0 : index
    %5 = vector.load %arg15[%c8, %c0_5] : memref<56x128xf32, #tpu.memory_space<vmem>>, vector<16x128xf32>
    tpu.vector_store %arg15[%c8, %c0_5], %4 {strides = array<i32>} : memref<56x128xf32, #tpu.memory_space<vmem>>, vector<16x128xf32>,
    %c16 = arith.constant 16 : index
    %c0_6 = arith.constant 0 : index
    %6 = vector.load %arg0[%c16, %c0_6] : memref<32x128xf32, #tpu.memory_space<vmem>>, vector<16x128xf32>
    %c32 = arith.constant 32 : index
    %c0_7 = arith.constant 0 : index
    %7 = vector.load %arg15[%c32, %c0_7] : memref<56x128xf32, #tpu.memory_space<vmem>>, vector<16x128xf32>
    tpu.vector_store %arg15[%c32, %c0_7], %6 {strides = array<i32>} : memref<56x128xf32, #tpu.memory_space<vmem>>, vector<16x128xf32>,
    %c0_8 = arith.constant 0 : index
    %c0_9 = arith.constant 0 : index
    %8 = vector.load %arg15[%c0_8, %c0_9] : memref<56x128xf32, #tpu.memory_space<vmem>>, vector<56x128xf32>
    %c0_10 = arith.constant 0 : index
    %c0_11 = arith.constant 0 : index
    %c0_12 = arith.constant 0 : index
    %9 = vector.load %arg1[%c0_10, %c0_11, %c0_12] : memref<3x128x128xf32, #tpu.memory_space<vmem>>, vector<1x128x128xf32>
    %10 = vector.shape_cast %9 : vector<1x128x128xf32> to vector<128x128xf32>
    %cst_13 = arith.constant dense<0.000000e+00> : vector<56x128xf32>
    %11 = tpu.matmul %8, %10, %cst_13 {dimension_numbers = #tpu.dot_dimension_numbers<[1], [0], [0], [1], [0, 0, 1, 1], [], []>} : vector<56x128xf32>, vector<128x128xf32>, vector<56x128xf32> -> vector<56x128xf32>
    %c1 = arith.constant 1 : index
    %c0_14 = arith.constant 0 : index
    %c0_15 = arith.constant 0 : index
    %12 = vector.load %arg1[%c1, %c0_14, %c0_15] : memref<3x128x128xf32, #tpu.memory_space<vmem>>, vector<1x128x128xf32>
    %13 = vector.shape_cast %12 : vector<1x128x128xf32> to vector<128x128xf32>
    %cst_16 = arith.constant dense<0.000000e+00> : vector<56x128xf32>
    %14 = tpu.matmul %8, %13, %cst_16 {dimension_numbers = #tpu.dot_dimension_numbers<[1], [0], [0], [1], [0, 0, 1, 1], [], []>} : vector<56x128xf32>, vector<128x128xf32>, vector<56x128xf32> -> vector<56x128xf32>
    %c2 = arith.constant 2 : index
    %c0_17 = arith.constant 0 : index
    %c0_18 = arith.constant 0 : index
    %15 = vector.load %arg1[%c2, %c0_17, %c0_18] : memref<3x128x128xf32, #tpu.memory_space<vmem>>, vector<1x128x128xf32>
    %16 = vector.shape_cast %15 : vector<1x128x128xf32> to vector<128x128xf32>
    %cst_19 = arith.constant dense<0.000000e+00> : vector<56x128xf32>
    %17 = tpu.matmul %8, %16, %cst_19 {dimension_numbers = #tpu.dot_dimension_numbers<[1], [0], [0], [1], [0, 0, 1, 1], [], []>} : vector<56x128xf32>, vector<128x128xf32>, vector<56x128xf32> -> vector<56x128xf32>
    %cst_20 = arith.constant 0.000000e+00 : f32
    %18 = vector.broadcast %cst_20 : f32 to vector<1x128xf32>
    %cst_21 = arith.constant 0.000000e+00 : f32
    %19 = vector.broadcast %cst_21 : f32 to vector<1x128xf32>
    %20 = vector.extract_strided_slice %11 {offsets = [7, 0], sizes = [16, 128], strides = [1, 1]} : vector<56x128xf32> to vector<16x128xf32>
    %21 = vector.extract_strided_slice %14 {offsets = [8, 0], sizes = [16, 128], strides = [1, 1]} : vector<56x128xf32> to vector<16x128xf32>
    %22 = arith.addf %20, %21 : vector<16x128xf32>
    %23 = vector.extract_strided_slice %17 {offsets = [9, 0], sizes = [16, 128], strides = [1, 1]} : vector<56x128xf32> to vector<16x128xf32>
    %24 = arith.addf %22, %23 : vector<16x128xf32>
    %cst_22 = arith.constant dense<0.000000e+00> : vector<128xf32>
    %25 = vector.multi_reduction <add>, %24, %cst_22 [0] : vector<16x128xf32> to vector<128xf32>
    %26 = vector.shape_cast %25 : vector<128xf32> to vector<1x128xf32>
    %27 = arith.addf %18, %26 : vector<1x128xf32>
    %28 = arith.mulf %24, %24 : vector<16x128xf32>
    %cst_23 = arith.constant dense<0.000000e+00> : vector<128xf32>
    %29 = vector.multi_reduction <add>, %28, %cst_23 [0] : vector<16x128xf32> to vector<128xf32>
    %30 = vector.shape_cast %29 : vector<128xf32> to vector<1x128xf32>
    %31 = arith.addf %19, %30 : vector<1x128xf32>
    %c8_24 = arith.constant 8 : index
    %c0_25 = arith.constant 0 : index
    %32 = vector.load %arg15[%c8_24, %c0_25] : memref<56x128xf32, #tpu.memory_space<vmem>>, vector<16x128xf32>
    tpu.vector_store %arg15[%c8_24, %c0_25], %24 {strides = array<i32>} : memref<56x128xf32, #tpu.memory_space<vmem>>, vector<16x128xf32>,
    %33 = vector.extract_strided_slice %11 {offsets = [31, 0], sizes = [16, 128], strides = [1, 1]} : vector<56x128xf32> to vector<16x128xf32>
    %34 = vector.extract_strided_slice %14 {offsets = [32, 0], sizes = [16, 128], strides = [1, 1]} : vector<56x128xf32> to vector<16x128xf32>
    %35 = arith.addf %33, %34 : vector<16x128xf32>
    %36 = vector.extract_strided_slice %17 {offsets = [33, 0], sizes = [16, 128], strides = [1, 1]} : vector<56x128xf32> to vector<16x128xf32>
    %37 = arith.addf %35, %36 : vector<16x128xf32>
    %cst_26 = arith.constant dense<0.000000e+00> : vector<128xf32>
    %38 = vector.multi_reduction <add>, %37, %cst_26 [0] : vector<16x128xf32> to vector<128xf32>
    %39 = vector.shape_cast %38 : vector<128xf32> to vector<1x128xf32>
    %40 = arith.addf %27, %39 : vector<1x128xf32>
    %41 = arith.mulf %37, %37 : vector<16x128xf32>
    %cst_27 = arith.constant dense<0.000000e+00> : vector<128xf32>
    %42 = vector.multi_reduction <add>, %41, %cst_27 [0] : vector<16x128xf32> to vector<128xf32>
    %43 = vector.shape_cast %42 : vector<128xf32> to vector<1x128xf32>
    %44 = arith.addf %31, %43 : vector<1x128xf32>
    %c32_28 = arith.constant 32 : index
    %c0_29 = arith.constant 0 : index
    %45 = vector.load %arg15[%c32_28, %c0_29] : memref<56x128xf32, #tpu.memory_space<vmem>>, vector<16x128xf32>
    tpu.vector_store %arg15[%c32_28, %c0_29], %37 {strides = array<i32>} : memref<56x128xf32, #tpu.memory_space<vmem>>, vector<16x128xf32>,
    %46 = tpu.concatenate %40, %44 in 0 : vector<1x128xf32>, vector<1x128xf32> -> vector<2x128xf32>
    %c0_30 = arith.constant 0 : index
    %c0_31 = arith.constant 0 : index
    %47 = vector.load %arg11[%c0_30, %c0_31] : memref<128x128xf32, #tpu.memory_space<vmem>>, vector<128x128xf32>
    %cst_32 = arith.constant dense<0.000000e+00> : vector<2x128xf32>
    %48 = tpu.matmul %46, %47, %cst_32 {dimension_numbers = #tpu.dot_dimension_numbers<[1], [0], [0], [1], [0, 0, 1, 1], [], []>} : vector<2x128xf32>, vector<128x128xf32>, vector<2x128xf32> -> vector<2x128xf32>
    %cst_33 = arith.constant 0.001953125 : f32
    %49 = vector.broadcast %cst_33 : f32 to vector<2x128xf32>
    %50 = arith.mulf %48, %49 : vector<2x128xf32>
    %51 = vector.extract_strided_slice %50 {offsets = [0, 0], sizes = [1, 128], strides = [1, 1]} : vector<2x128xf32> to vector<1x128xf32>
    %52 = vector.extract_strided_slice %50 {offsets = [1, 0], sizes = [1, 128], strides = [1, 1]} : vector<2x128xf32> to vector<1x128xf32>
    %53 = arith.mulf %51, %51 : vector<1x128xf32>
    %54 = arith.subf %52, %53 : vector<1x128xf32>
    %cst_34 = arith.constant 9.99999974E-6 : f32
    %55 = vector.broadcast %cst_34 : f32 to vector<1x128xf32>
    %56 = arith.addf %54, %55 : vector<1x128xf32>
    %57 = math.rsqrt %56 : vector<1x128xf32>
    %c0_35 = arith.constant 0 : index
    %c0_36 = arith.constant 0 : index
    %58 = vector.load %arg2[%c0_35, %c0_36] : memref<1x128xf32, #tpu.memory_space<vmem>>, vector<1x128xf32>
    %59 = arith.mulf %57, %58 : vector<1x128xf32>
    %c0_37 = arith.constant 0 : index
    %c0_38 = arith.constant 0 : index
    %60 = vector.load %arg3[%c0_37, %c0_38] : memref<1x128xf32, #tpu.memory_space<vmem>>, vector<1x128xf32>
    %61 = arith.mulf %51, %59 : vector<1x128xf32>
    %62 = arith.subf %60, %61 : vector<1x128xf32>
    %c8_39 = arith.constant 8 : index
    %c0_40 = arith.constant 0 : index
    %63 = vector.load %arg15[%c8_39, %c0_40] : memref<56x128xf32, #tpu.memory_space<vmem>>, vector<16x128xf32>
    %64 = vector.broadcast %59 : vector<1x128xf32> to vector<16x128xf32>
    %65 = arith.mulf %63, %64 : vector<16x128xf32>
    %66 = vector.broadcast %62 : vector<1x128xf32> to vector<16x128xf32>
    %67 = arith.addf %65, %66 : vector<16x128xf32>
    %68 = math.exp %67 : vector<16x128xf32>
    %cst_41 = arith.constant 1.000000e+00 : f32
    %69 = vector.broadcast %cst_41 : f32 to vector<16x128xf32>
    %70 = arith.addf %69, %68 : vector<16x128xf32>
    %71 = arith.mulf %70, %70 : vector<16x128xf32>
    %cst_42 = arith.constant 1.000000e+00 : f32
    %72 = vector.broadcast %cst_42 : f32 to vector<16x128xf32>
    %73 = arith.addf %71, %72 : vector<16x128xf32>
    %74 = tpu.reciprocal %73 : vector<16x128xf32> -> vector<16x128xf32>
    %cst_43 = arith.constant 2.000000e+00 : f32
    %75 = vector.broadcast %cst_43 : f32 to vector<16x128xf32>
    %76 = arith.mulf %75, %74 : vector<16x128xf32>
    %cst_44 = arith.constant 1.000000e+00 : f32
    %77 = vector.broadcast %cst_44 : f32 to vector<16x128xf32>
    %78 = arith.subf %77, %76 : vector<16x128xf32>
    %79 = arith.mulf %67, %78 : vector<16x128xf32>
    %c8_45 = arith.constant 8 : index
    %c0_46 = arith.constant 0 : index
    %80 = vector.load %arg15[%c8_45, %c0_46] : memref<56x128xf32, #tpu.memory_space<vmem>>, vector<16x128xf32>
    tpu.vector_store %arg15[%c8_45, %c0_46], %79 {strides = array<i32>} : memref<56x128xf32, #tpu.memory_space<vmem>>, vector<16x128xf32>,
    %c32_47 = arith.constant 32 : index
    %c0_48 = arith.constant 0 : index
    %81 = vector.load %arg15[%c32_47, %c0_48] : memref<56x128xf32, #tpu.memory_space<vmem>>, vector<16x128xf32>
    %82 = vector.broadcast %59 : vector<1x128xf32> to vector<16x128xf32>
    %83 = arith.mulf %81, %82 : vector<16x128xf32>
    %84 = vector.broadcast %62 : vector<1x128xf32> to vector<16x128xf32>
    %85 = arith.addf %83, %84 : vector<16x128xf32>
    %86 = math.exp %85 : vector<16x128xf32>
    %cst_49 = arith.constant 1.000000e+00 : f32
    %87 = vector.broadcast %cst_49 : f32 to vector<16x128xf32>
    %88 = arith.addf %87, %86 : vector<16x128xf32>
    %89 = arith.mulf %88, %88 : vector<16x128xf32>
    %cst_50 = arith.constant 1.000000e+00 : f32
    %90 = vector.broadcast %cst_50 : f32 to vector<16x128xf32>
    %91 = arith.addf %89, %90 : vector<16x128xf32>
    %92 = tpu.reciprocal %91 : vector<16x128xf32> -> vector<16x128xf32>
    %cst_51 = arith.constant 2.000000e+00 : f32
    %93 = vector.broadcast %cst_51 : f32 to vector<16x128xf32>
    %94 = arith.mulf %93, %92 : vector<16x128xf32>
    %cst_52 = arith.constant 1.000000e+00 : f32
    %95 = vector.broadcast %cst_52 : f32 to vector<16x128xf32>
    %96 = arith.subf %95, %94 : vector<16x128xf32>
    %97 = arith.mulf %85, %96 : vector<16x128xf32>
    %c32_53 = arith.constant 32 : index
    %c0_54 = arith.constant 0 : index
    %98 = vector.load %arg15[%c32_53, %c0_54] : memref<56x128xf32, #tpu.memory_space<vmem>>, vector<16x128xf32>
    tpu.vector_store %arg15[%c32_53, %c0_54], %97 {strides = array<i32>} : memref<56x128xf32, #tpu.memory_space<vmem>>, vector<16x128xf32>,
    %c0_55 = arith.constant 0 : index
    %c0_56 = arith.constant 0 : index
    %99 = vector.load %arg15[%c0_55, %c0_56] : memref<56x128xf32, #tpu.memory_space<vmem>>, vector<56x128xf32>
    %c0_57 = arith.constant 0 : index
    %c0_58 = arith.constant 0 : index
    %c0_59 = arith.constant 0 : index
    %100 = vector.load %arg4[%c0_57, %c0_58, %c0_59] : memref<3x128x128xf32, #tpu.memory_space<vmem>>, vector<1x128x128xf32>
    %101 = vector.shape_cast %100 : vector<1x128x128xf32> to vector<128x128xf32>
    %cst_60 = arith.constant dense<0.000000e+00> : vector<56x128xf32>
    %102 = tpu.matmul %99, %101, %cst_60 {dimension_numbers = #tpu.dot_dimension_numbers<[1], [0], [0], [1], [0, 0, 1, 1], [], []>} : vector<56x128xf32>, vector<128x128xf32>, vector<56x128xf32> -> vector<56x128xf32>
    %c1_61 = arith.constant 1 : index
    %c0_62 = arith.constant 0 : index
    %c0_63 = arith.constant 0 : index
    %103 = vector.load %arg4[%c1_61, %c0_62, %c0_63] : memref<3x128x128xf32, #tpu.memory_space<vmem>>, vector<1x128x128xf32>
    %104 = vector.shape_cast %103 : vector<1x128x128xf32> to vector<128x128xf32>
    %cst_64 = arith.constant dense<0.000000e+00> : vector<56x128xf32>
    %105 = tpu.matmul %99, %104, %cst_64 {dimension_numbers = #tpu.dot_dimension_numbers<[1], [0], [0], [1], [0, 0, 1, 1], [], []>} : vector<56x128xf32>, vector<128x128xf32>, vector<56x128xf32> -> vector<56x128xf32>
    %c2_65 = arith.constant 2 : index
    %c0_66 = arith.constant 0 : index
    %c0_67 = arith.constant 0 : index
    %106 = vector.load %arg4[%c2_65, %c0_66, %c0_67] : memref<3x128x128xf32, #tpu.memory_space<vmem>>, vector<1x128x128xf32>
    %107 = vector.shape_cast %106 : vector<1x128x128xf32> to vector<128x128xf32>
    %cst_68 = arith.constant dense<0.000000e+00> : vector<56x128xf32>
    %108 = tpu.matmul %99, %107, %cst_68 {dimension_numbers = #tpu.dot_dimension_numbers<[1], [0], [0], [1], [0, 0, 1, 1], [], []>} : vector<56x128xf32>, vector<128x128xf32>, vector<56x128xf32> -> vector<56x128xf32>
    %cst_69 = arith.constant 0.000000e+00 : f32
    %109 = vector.broadcast %cst_69 : f32 to vector<1x128xf32>
    %cst_70 = arith.constant 0.000000e+00 : f32
    %110 = vector.broadcast %cst_70 : f32 to vector<1x128xf32>
    %111 = vector.extract_strided_slice %102 {offsets = [7, 0], sizes = [16, 128], strides = [1, 1]} : vector<56x128xf32> to vector<16x128xf32>
    %112 = vector.extract_strided_slice %105 {offsets = [8, 0], sizes = [16, 128], strides = [1, 1]} : vector<56x128xf32> to vector<16x128xf32>
    %113 = arith.addf %111, %112 : vector<16x128xf32>
    %114 = vector.extract_strided_slice %108 {offsets = [9, 0], sizes = [16, 128], strides = [1, 1]} : vector<56x128xf32> to vector<16x128xf32>
    %115 = arith.addf %113, %114 : vector<16x128xf32>
    %cst_71 = arith.constant dense<0.000000e+00> : vector<128xf32>
    %116 = vector.multi_reduction <add>, %115, %cst_71 [0] : vector<16x128xf32> to vector<128xf32>
    %117 = vector.shape_cast %116 : vector<128xf32> to vector<1x128xf32>
    %118 = arith.addf %109, %117 : vector<1x128xf32>
    %119 = arith.mulf %115, %115 : vector<16x128xf32>
    %cst_72 = arith.constant dense<0.000000e+00> : vector<128xf32>
    %120 = vector.multi_reduction <add>, %119, %cst_72 [0] : vector<16x128xf32> to vector<128xf32>
    %121 = vector.shape_cast %120 : vector<128xf32> to vector<1x128xf32>
    %122 = arith.addf %110, %121 : vector<1x128xf32>
    %c8_73 = arith.constant 8 : index
    %c0_74 = arith.constant 0 : index
    %123 = vector.load %arg15[%c8_73, %c0_74] : memref<56x128xf32, #tpu.memory_space<vmem>>, vector<16x128xf32>
    tpu.vector_store %arg15[%c8_73, %c0_74], %115 {strides = array<i32>} : memref<56x128xf32, #tpu.memory_space<vmem>>, vector<16x128xf32>,
    %124 = vector.extract_strided_slice %102 {offsets = [31, 0], sizes = [16, 128], strides = [1, 1]} : vector<56x128xf32> to vector<16x128xf32>
    %125 = vector.extract_strided_slice %105 {offsets = [32, 0], sizes = [16, 128], strides = [1, 1]} : vector<56x128xf32> to vector<16x128xf32>
    %126 = arith.addf %124, %125 : vector<16x128xf32>
    %127 = vector.extract_strided_slice %108 {offsets = [33, 0], sizes = [16, 128], strides = [1, 1]} : vector<56x128xf32> to vector<16x128xf32>
    %128 = arith.addf %126, %127 : vector<16x128xf32>
    %cst_75 = arith.constant dense<0.000000e+00> : vector<128xf32>
    %129 = vector.multi_reduction <add>, %128, %cst_75 [0] : vector<16x128xf32> to vector<128xf32>
    %130 = vector.shape_cast %129 : vector<128xf32> to vector<1x128xf32>
    %131 = arith.addf %118, %130 : vector<1x128xf32>
    %132 = arith.mulf %128, %128 : vector<16x128xf32>
    %cst_76 = arith.constant dense<0.000000e+00> : vector<128xf32>
    %133 = vector.multi_reduction <add>, %132, %cst_76 [0] : vector<16x128xf32> to vector<128xf32>
    %134 = vector.shape_cast %133 : vector<128xf32> to vector<1x128xf32>
    %135 = arith.addf %122, %134 : vector<1x128xf32>
    %c32_77 = arith.constant 32 : index
    %c0_78 = arith.constant 0 : index
    %136 = vector.load %arg15[%c32_77, %c0_78] : memref<56x128xf32, #tpu.memory_space<vmem>>, vector<16x128xf32>
    tpu.vector_store %arg15[%c32_77, %c0_78], %128 {strides = array<i32>} : memref<56x128xf32, #tpu.memory_space<vmem>>, vector<16x128xf32>,
    %137 = tpu.concatenate %131, %135 in 0 : vector<1x128xf32>, vector<1x128xf32> -> vector<2x128xf32>
    %c0_79 = arith.constant 0 : index
    %c0_80 = arith.constant 0 : index
    %138 = vector.load %arg11[%c0_79, %c0_80] : memref<128x128xf32, #tpu.memory_space<vmem>>, vector<128x128xf32>
    %cst_81 = arith.constant dense<0.000000e+00> : vector<2x128xf32>
    %139 = tpu.matmul %137, %138, %cst_81 {dimension_numbers = #tpu.dot_dimension_numbers<[1], [0], [0], [1], [0, 0, 1, 1], [], []>} : vector<2x128xf32>, vector<128x128xf32>, vector<2x128xf32> -> vector<2x128xf32>
    %cst_82 = arith.constant 0.001953125 : f32
    %140 = vector.broadcast %cst_82 : f32 to vector<2x128xf32>
    %141 = arith.mulf %139, %140 : vector<2x128xf32>
    %142 = vector.extract_strided_slice %141 {offsets = [0, 0], sizes = [1, 128], strides = [1, 1]} : vector<2x128xf32> to vector<1x128xf32>
    %143 = vector.extract_strided_slice %141 {offsets = [1, 0], sizes = [1, 128], strides = [1, 1]} : vector<2x128xf32> to vector<1x128xf32>
    %144 = arith.mulf %142, %142 : vector<1x128xf32>
    %145 = arith.subf %143, %144 : vector<1x128xf32>
    %cst_83 = arith.constant 9.99999974E-6 : f32
    %146 = vector.broadcast %cst_83 : f32 to vector<1x128xf32>
    %147 = arith.addf %145, %146 : vector<1x128xf32>
    %148 = math.rsqrt %147 : vector<1x128xf32>
    %c0_84 = arith.constant 0 : index
    %c0_85 = arith.constant 0 : index
    %149 = vector.load %arg5[%c0_84, %c0_85] : memref<1x128xf32, #tpu.memory_space<vmem>>, vector<1x128xf32>
    %150 = arith.mulf %148, %149 : vector<1x128xf32>
    %c0_86 = arith.constant 0 : index
    %c0_87 = arith.constant 0 : index
    %151 = vector.load %arg6[%c0_86, %c0_87] : memref<1x128xf32, #tpu.memory_space<vmem>>, vector<1x128xf32>
    %152 = arith.mulf %142, %150 : vector<1x128xf32>
    %153 = arith.subf %151, %152 : vector<1x128xf32>
    %cst_88 = arith.constant 6.250000e-02 : f32
    %154 = vector.broadcast %cst_88 : f32 to vector<1x128xf32>
    %155 = arith.mulf %117, %154 : vector<1x128xf32>
    %156 = arith.mulf %155, %150 : vector<1x128xf32>
    %157 = arith.addf %156, %153 : vector<1x128xf32>
    %c0_89 = arith.constant 0 : index
    %c0_90 = arith.constant 0 : index
    %158 = vector.load %arg12[%c0_89, %c0_90] : memref<128x8xf32, #tpu.memory_space<vmem>>, vector<128x8xf32>
    %cst_91 = arith.constant dense<0.000000e+00> : vector<1x8xf32>
    %159 = tpu.matmul %157, %158, %cst_91 {dimension_numbers = #tpu.dot_dimension_numbers<[1], [0], [0], [1], [0, 0, 1, 1], [], []>} : vector<1x128xf32>, vector<128x8xf32>, vector<1x8xf32> -> vector<1x8xf32>
    %cst_92 = arith.constant 6.250000e-02 : f32
    %160 = vector.broadcast %cst_92 : f32 to vector<1x8xf32>
    %161 = arith.mulf %159, %160 : vector<1x8xf32>
    %c0_93 = arith.constant 0 : index
    %c0_94 = arith.constant 0 : index
    %162 = vector.load %arg7[%c0_93, %c0_94] : memref<8x2xf32, #tpu.memory_space<vmem>>, vector<8x2xf32>
    %cst_95 = arith.constant dense<0.000000e+00> : vector<1x2xf32>
    %163 = tpu.matmul %161, %162, %cst_95 {dimension_numbers = #tpu.dot_dimension_numbers<[1], [0], [0], [1], [0, 0, 1, 1], [], []>} : vector<1x8xf32>, vector<8x2xf32>, vector<1x2xf32> -> vector<1x2xf32>
    %c0_96 = arith.constant 0 : index
    %c0_97 = arith.constant 0 : index
    %164 = vector.load %arg8[%c0_96, %c0_97] : memref<1x2xf32, #tpu.memory_space<vmem>>, vector<1x2xf32>
    %165 = arith.addf %163, %164 : vector<1x2xf32>
    %cst_98 = arith.constant 0.000000e+00 : f32
    %166 = vector.broadcast %cst_98 : f32 to vector<1x2xf32>
    %167 = arith.maximumf %165, %166 : vector<1x2xf32>
    %c0_99 = arith.constant 0 : index
    %c0_100 = arith.constant 0 : index
    %168 = vector.load %arg9[%c0_99, %c0_100] : memref<2x8xf32, #tpu.memory_space<vmem>>, vector<2x8xf32>
    %cst_101 = arith.constant dense<0.000000e+00> : vector<1x8xf32>
    %169 = tpu.matmul %167, %168, %cst_101 {dimension_numbers = #tpu.dot_dimension_numbers<[1], [0], [0], [1], [0, 0, 1, 1], [], []>} : vector<1x2xf32>, vector<2x8xf32>, vector<1x8xf32> -> vector<1x8xf32>
    %c0_102 = arith.constant 0 : index
    %c0_103 = arith.constant 0 : index
    %170 = vector.load %arg10[%c0_102, %c0_103] : memref<1x8xf32, #tpu.memory_space<vmem>>, vector<1x8xf32>
    %171 = arith.addf %169, %170 : vector<1x8xf32>
    %cst_104 = arith.constant 0.000000e+00 : f32
    %172 = vector.broadcast %cst_104 : f32 to vector<1x8xf32>
    %173 = arith.subf %172, %171 : vector<1x8xf32>
    %174 = math.exp %173 : vector<1x8xf32>
    %cst_105 = arith.constant 1.000000e+00 : f32
    %175 = vector.broadcast %cst_105 : f32 to vector<1x8xf32>
    %176 = arith.addf %175, %174 : vector<1x8xf32>
    %177 = tpu.reciprocal %176 : vector<1x8xf32> -> vector<1x8xf32>
    %c0_106 = arith.constant 0 : index
    %c0_107 = arith.constant 0 : index
    %178 = vector.load %arg13[%c0_106, %c0_107] : memref<8x128xf32, #tpu.memory_space<vmem>>, vector<8x128xf32>
    %cst_108 = arith.constant dense<0.000000e+00> : vector<1x128xf32>
    %179 = tpu.matmul %177, %178, %cst_108 {dimension_numbers = #tpu.dot_dimension_numbers<[1], [0], [0], [1], [0, 0, 1, 1], [], []>} : vector<1x8xf32>, vector<8x128xf32>, vector<1x128xf32> -> vector<1x128xf32>
    %c8_109 = arith.constant 8 : index
    %c0_110 = arith.constant 0 : index
    %180 = vector.load %arg15[%c8_109, %c0_110] : memref<56x128xf32, #tpu.memory_space<vmem>>, vector<16x128xf32>
    %181 = vector.broadcast %150 : vector<1x128xf32> to vector<16x128xf32>
    %182 = arith.mulf %180, %181 : vector<16x128xf32>
    %183 = vector.broadcast %153 : vector<1x128xf32> to vector<16x128xf32>
    %184 = arith.addf %182, %183 : vector<16x128xf32>
    %c0_111 = arith.constant 0 : index
    %c0_112 = arith.constant 0 : index
    %185 = vector.load %arg0[%c0_111, %c0_112] : memref<32x128xf32, #tpu.memory_space<vmem>>, vector<16x128xf32>
    %186 = vector.broadcast %179 : vector<1x128xf32> to vector<16x128xf32>
    %187 = arith.mulf %184, %186 : vector<16x128xf32>
    %188 = arith.addf %185, %187 : vector<16x128xf32>
    %cst_113 = arith.constant 0.000000e+00 : f32
    %189 = vector.broadcast %cst_113 : f32 to vector<16x128xf32>
    %190 = arith.subf %189, %188 : vector<16x128xf32>
    %191 = math.exp %190 : vector<16x128xf32>
    %cst_114 = arith.constant 1.000000e+00 : f32
    %192 = vector.broadcast %cst_114 : f32 to vector<16x128xf32>
    %193 = arith.addf %192, %191 : vector<16x128xf32>
    %194 = tpu.reciprocal %193 : vector<16x128xf32> -> vector<16x128xf32>
    %195 = arith.mulf %188, %194 : vector<16x128xf32>
    %c0_115 = arith.constant 0 : index
    %c0_116 = arith.constant 0 : index
    %196 = vector.load %arg14[%c0_115, %c0_116] : memref<32x128xf32, #tpu.memory_space<vmem>>, vector<16x128xf32>
    tpu.vector_store %arg14[%c0_115, %c0_116], %195 {strides = array<i32>} : memref<32x128xf32, #tpu.memory_space<vmem>>, vector<16x128xf32>,
    %cst_117 = arith.constant 6.250000e-02 : f32
    %197 = vector.broadcast %cst_117 : f32 to vector<1x128xf32>
    %198 = arith.mulf %130, %197 : vector<1x128xf32>
    %199 = arith.mulf %198, %150 : vector<1x128xf32>
    %200 = arith.addf %199, %153 : vector<1x128xf32>
    %c0_118 = arith.constant 0 : index
    %c0_119 = arith.constant 0 : index
    %201 = vector.load %arg12[%c0_118, %c0_119] : memref<128x8xf32, #tpu.memory_space<vmem>>, vector<128x8xf32>
    %cst_120 = arith.constant dense<0.000000e+00> : vector<1x8xf32>
    %202 = tpu.matmul %200, %201, %cst_120 {dimension_numbers = #tpu.dot_dimension_numbers<[1], [0], [0], [1], [0, 0, 1, 1], [], []>} : vector<1x128xf32>, vector<128x8xf32>, vector<1x8xf32> -> vector<1x8xf32>
    %cst_121 = arith.constant 6.250000e-02 : f32
    %203 = vector.broadcast %cst_121 : f32 to vector<1x8xf32>
    %204 = arith.mulf %202, %203 : vector<1x8xf32>
    %c0_122 = arith.constant 0 : index
    %c0_123 = arith.constant 0 : index
    %205 = vector.load %arg7[%c0_122, %c0_123] : memref<8x2xf32, #tpu.memory_space<vmem>>, vector<8x2xf32>
    %cst_124 = arith.constant dense<0.000000e+00> : vector<1x2xf32>
    %206 = tpu.matmul %204, %205, %cst_124 {dimension_numbers = #tpu.dot_dimension_numbers<[1], [0], [0], [1], [0, 0, 1, 1], [], []>} : vector<1x8xf32>, vector<8x2xf32>, vector<1x2xf32> -> vector<1x2xf32>
    %c0_125 = arith.constant 0 : index
    %c0_126 = arith.constant 0 : index
    %207 = vector.load %arg8[%c0_125, %c0_126] : memref<1x2xf32, #tpu.memory_space<vmem>>, vector<1x2xf32>
    %208 = arith.addf %206, %207 : vector<1x2xf32>
    %cst_127 = arith.constant 0.000000e+00 : f32
    %209 = vector.broadcast %cst_127 : f32 to vector<1x2xf32>
    %210 = arith.maximumf %208, %209 : vector<1x2xf32>
    %c0_128 = arith.constant 0 : index
    %c0_129 = arith.constant 0 : index
    %211 = vector.load %arg9[%c0_128, %c0_129] : memref<2x8xf32, #tpu.memory_space<vmem>>, vector<2x8xf32>
    %cst_130 = arith.constant dense<0.000000e+00> : vector<1x8xf32>
    %212 = tpu.matmul %210, %211, %cst_130 {dimension_numbers = #tpu.dot_dimension_numbers<[1], [0], [0], [1], [0, 0, 1, 1], [], []>} : vector<1x2xf32>, vector<2x8xf32>, vector<1x8xf32> -> vector<1x8xf32>
    %c0_131 = arith.constant 0 : index
    %c0_132 = arith.constant 0 : index
    %213 = vector.load %arg10[%c0_131, %c0_132] : memref<1x8xf32, #tpu.memory_space<vmem>>, vector<1x8xf32>
    %214 = arith.addf %212, %213 : vector<1x8xf32>
    %cst_133 = arith.constant 0.000000e+00 : f32
    %215 = vector.broadcast %cst_133 : f32 to vector<1x8xf32>
    %216 = arith.subf %215, %214 : vector<1x8xf32>
    %217 = math.exp %216 : vector<1x8xf32>
    %cst_134 = arith.constant 1.000000e+00 : f32
    %218 = vector.broadcast %cst_134 : f32 to vector<1x8xf32>
    %219 = arith.addf %218, %217 : vector<1x8xf32>
    %220 = tpu.reciprocal %219 : vector<1x8xf32> -> vector<1x8xf32>
    %c0_135 = arith.constant 0 : index
    %c0_136 = arith.constant 0 : index
    %221 = vector.load %arg13[%c0_135, %c0_136] : memref<8x128xf32, #tpu.memory_space<vmem>>, vector<8x128xf32>
    %cst_137 = arith.constant dense<0.000000e+00> : vector<1x128xf32>
    %222 = tpu.matmul %220, %221, %cst_137 {dimension_numbers = #tpu.dot_dimension_numbers<[1], [0], [0], [1], [0, 0, 1, 1], [], []>} : vector<1x8xf32>, vector<8x128xf32>, vector<1x128xf32> -> vector<1x128xf32>
    %c32_138 = arith.constant 32 : index
    %c0_139 = arith.constant 0 : index
    %223 = vector.load %arg15[%c32_138, %c0_139] : memref<56x128xf32, #tpu.memory_space<vmem>>, vector<16x128xf32>
    %224 = vector.broadcast %150 : vector<1x128xf32> to vector<16x128xf32>
    %225 = arith.mulf %223, %224 : vector<16x128xf32>
    %226 = vector.broadcast %153 : vector<1x128xf32> to vector<16x128xf32>
    %227 = arith.addf %225, %226 : vector<16x128xf32>
    %c16_140 = arith.constant 16 : index
    %c0_141 = arith.constant 0 : index
    %228 = vector.load %arg0[%c16_140, %c0_141] : memref<32x128xf32, #tpu.memory_space<vmem>>, vector<16x128xf32>
    %229 = vector.broadcast %222 : vector<1x128xf32> to vector<16x128xf32>
    %230 = arith.mulf %227, %229 : vector<16x128xf32>
    %231 = arith.addf %228, %230 : vector<16x128xf32>
    %cst_142 = arith.constant 0.000000e+00 : f32
    %232 = vector.broadcast %cst_142 : f32 to vector<16x128xf32>
    %233 = arith.subf %232, %231 : vector<16x128xf32>
    %234 = math.exp %233 : vector<16x128xf32>
    %cst_143 = arith.constant 1.000000e+00 : f32
    %235 = vector.broadcast %cst_143 : f32 to vector<16x128xf32>
    %236 = arith.addf %235, %234 : vector<16x128xf32>
    %237 = tpu.reciprocal %236 : vector<16x128xf32> -> vector<16x128xf32>
    %238 = arith.mulf %231, %237 : vector<16x128xf32>
    %c16_144 = arith.constant 16 : index
    %c0_145 = arith.constant 0 : index
    %239 = vector.load %arg14[%c16_144, %c0_145] : memref<32x128xf32, #tpu.memory_space<vmem>>, vector<16x128xf32>
    tpu.vector_store %arg14[%c16_144, %c0_145], %238 {strides = array<i32>} : memref<32x128xf32, #tpu.memory_space<vmem>>, vector<16x128xf32>,
    return
  }
}

</mosaic_0001>

<llo_original>
// kernel: tpu_custom_call.1
$region0: #{tpu_custom_call.1}
  #allocation0 [shape = 'u32[]', space=smem, size = 0x4, offset = 0x4, fixed_abs, tag = 'smem constant byte address 0x4 - core index']
  #allocation1 [shape = 'u32[144,128]{1,0:T(1,128)}', space=vmem, size = 0x12000, scoped, tag = 'internal scratch']
  #allocation2 [shape = 'f32[56,128]{1,0:T(8,128)}', space=vmem, size = 0x7000, scoped, tag = 'scratch operand']
  %s0 = inlined_call_operand.vmem [shape: f32[32,128], index: 0, kind: input, shape index: {}]
  %s1 = inlined_call_operand.hbm [shape: f32[3,128,128], index: 1, kind: input, shape index: {}]
  %s2 = inlined_call_operand.vmem [shape: f32[1,128], index: 2, kind: input, shape index: {}]
  %s3 = inlined_call_operand.hbm [shape: f32[1,128], index: 3, kind: input, shape index: {}]
  %s4 = inlined_call_operand.hbm [shape: f32[3,128,128], index: 4, kind: input, shape index: {}]
  %s5 = inlined_call_operand.hbm [shape: f32[1,128], index: 5, kind: input, shape index: {}]
  %s6 = inlined_call_operand.hbm [shape: f32[1,128], index: 6, kind: input, shape index: {}]
  %s7 = inlined_call_operand.vmem [shape: f32[8,2], index: 7, kind: input, shape index: {}]
  %s8 = inlined_call_operand.hbm [shape: f32[1,2], index: 8, kind: input, shape index: {}]
  %s9 = inlined_call_operand.hbm [shape: f32[2,8], index: 9, kind: input, shape index: {}]
  %s10 = inlined_call_operand.hbm [shape: f32[1,8], index: 10, kind: input, shape index: {}]
  %s11 = inlined_call_operand.vmem [shape: f32[128,128], index: 11, kind: input, shape index: {}]
  %s12 = inlined_call_operand.vmem [shape: f32[128,8], index: 12, kind: input, shape index: {}]
  %s13 = inlined_call_operand.vmem [shape: f32[8,128], index: 13, kind: input, shape index: {}]
  %s14 = inlined_call_operand.hbm [shape: f32[32,128], index: 14, kind: output, shape index: {}]
  %s15 = sld [smem:[#allocation0]]
  $region98: #{tpu_custom_call.1} parent=0
    _
  %s17 = ssub.s32 1, %s15
  %s18 = scalar_select 0, %s17, %s15
  $region1: #{tpu_custom_call.1} parent=0
    #allocation3 [shape = 'u8[196608]{0}', space=vmem, size = 0x30000, scoped, tag = 'input window, operand 1, single buffered']
    #allocation4 [shape = 's32[1]{0}', space=sflag, size = 0x4, scoped, tag = 'scoped memory for tpu_custom_call.1']
    #allocation5 [shape = 's32[1]{0}', space=sflag, size = 0x4, scoped, tag = 'scoped memory for tpu_custom_call.1']
    #allocation6 [shape = 'u8[512]{0}', space=vmem, size = 0x400, scoped, tag = 'input window, operand 3, single buffered']
    #allocation7 [shape = 's32[1]{0}', space=sflag, size = 0x4, scoped, tag = 'scoped memory for tpu_custom_call.1']
    #allocation8 [shape = 'u8[196608]{0}', space=vmem, size = 0x30000, scoped, tag = 'input window, operand 4, single buffered']
    #allocation9 [shape = 'u8[512]{0}', space=vmem, size = 0x400, scoped, tag = 'input window, operand 5, single buffered']
    #allocation10 [shape = 's32[1]{0}', space=sflag, size = 0x4, scoped, tag = 'scoped memory for tpu_custom_call.1']
    #allocation11 [shape = 'u8[512]{0}', space=vmem, size = 0x400, scoped, tag = 'input window, operand 6, single buffered']
    #allocation12 [shape = 'u8[512]{0}', space=vmem, size = 0x400, scoped, tag = 'input window, operand 8, single buffered']
    #allocation13 [shape = 's32[1]{0}', space=sflag, size = 0x4, scoped, tag = 'scoped memory for tpu_custom_call.1']
    #allocation14 [shape = 'u8[1024]{0}', space=vmem, size = 0x400, scoped, tag = 'input window, operand 9, single buffered']
    #allocation15 [shape = 'u8[512]{0}', space=vmem, size = 0x400, scoped, tag = 'input window, operand 10, single buffered']
    #allocation16 [shape = 's32[1]{0}', space=sflag, size = 0x4, scoped, tag = 'scoped memory for tpu_custom_call.1']
    #allocation17 [shape = 'u8[16384]{0}', space=vmem, size = 0x4000, scoped, tag = 'output window, operand 0, single buffered']
    %19 = vsyncpa [#allocation4], 0
    %20 = vsyncpa [#allocation7], 0
    %21 = vsyncpa [#allocation10], 0
    %22 = vsyncpa [#allocation13], 0
    %23 = vsyncpa [#allocation16], 0
    %24 = vsyncpa [#allocation5], 0
    // Predicated region
    $region2: #{tpu_custom_call.1} parent=1 // pred_check
      _
    $region3: #{tpu_custom_call.1} parent=1 // pred_check_branch
      %26 = sbr.rel (0) target = $region5
    $region4: #{tpu_custom_call.1} parent=1 // pred_region
      _
    $region5: #{tpu_custom_call.1} parent=1 // pred_fallthru
      _
    // Predicated region
    $region6: #{tpu_custom_call.1} parent=1 // pred_check
      _
    $region7: #{tpu_custom_call.1} parent=1 // pred_check_branch
      %28 = sbr.rel (0) target = $region9
    $region8: #{tpu_custom_call.1} parent=1 // pred_region
      %s30 = ssub.s32 6144, 6144
      %31 = vsyncadd [#allocation4], %s30
      %s32 = sshll.u32 [#allocation3], 4
      %s33 = int_to_ptr.vmem [resolvable:$true] %s32
      %38 = dma.hbm_to_vmem [thread:$0]  %s1, 6144, %s33, [#allocation4], 128, 128, 8
    $region9: #{tpu_custom_call.1} parent=1 // pred_fallthru
      _
    // Predicated region
    $region10: #{tpu_custom_call.1} parent=1 // pred_check
      _
    $region11: #{tpu_custom_call.1} parent=1 // pred_check_branch
      %40 = sbr.rel (0) target = $region13
    $region12: #{tpu_custom_call.1} parent=1 // pred_region
      _
    $region13: #{tpu_custom_call.1} parent=1 // pred_fallthru
      _
    // Predicated region
    $region14: #{tpu_custom_call.1} parent=1 // pred_check
      _
    $region15: #{tpu_custom_call.1} parent=1 // pred_check_branch
      %42 = sbr.rel (0) target = $region17
    $region16: #{tpu_custom_call.1} parent=1 // pred_region
      %s44 = ssub.s32 16, 16
      %45 = vsyncadd [#allocation7], %s44
      %s47 = sshll.u32 [#allocation6], 4
      %s48 = int_to_ptr.vmem [resolvable:$true] %s47
      %50 = dma.hbm_to_vmem [thread:$0]  %s3, 16, %s48, [#allocation7]
    $region17: #{tpu_custom_call.1} parent=1 // pred_fallthru
      _
    // Predicated region
    $region18: #{tpu_custom_call.1} parent=1 // pred_check
      _
    $region19: #{tpu_custom_call.1} parent=1 // pred_check_branch
      %52 = sbr.rel (0) target = $region21
    $region20: #{tpu_custom_call.1} parent=1 // pred_region
      %s54 = ssub.s32 6144, 6144
      %55 = vsyncadd [#allocation7], %s54
      %s56 = sshll.u32 [#allocation8], 4
      %s57 = int_to_ptr.vmem [resolvable:$true] %s56
      %62 = dma.hbm_to_vmem [thread:$0]  %s4, 6144, %s57, [#allocation7], 128, 128, 8
    $region21: #{tpu_custom_call.1} parent=1 // pred_fallthru
      _
    // Predicated region
    $region22: #{tpu_custom_call.1} parent=1 // pred_check
      _
    $region23: #{tpu_custom_call.1} parent=1 // pred_check_branch
      %64 = sbr.rel (0) target = $region25
    $region24: #{tpu_custom_call.1} parent=1 // pred_region
      %s66 = ssub.s32 16, 16
      %67 = vsyncadd [#allocation10], %s66
      %s69 = sshll.u32 [#allocation9], 4
      %s70 = int_to_ptr.vmem [resolvable:$true] %s69
      %72 = dma.hbm_to_vmem [thread:$0]  %s5, 16, %s70, [#allocation10]
    $region25: #{tpu_custom_call.1} parent=1 // pred_fallthru
      _
    // Predicated region
    $region26: #{tpu_custom_call.1} parent=1 // pred_check
      _
    $region27: #{tpu_custom_call.1} parent=1 // pred_check_branch
      %74 = sbr.rel (0) target = $region29
    $region28: #{tpu_custom_call.1} parent=1 // pred_region
      %s76 = ssub.s32 16, 16
      %77 = vsyncadd [#allocation10], %s76
      %s79 = sshll.u32 [#allocation11], 4
      %s80 = int_to_ptr.vmem [resolvable:$true] %s79
      %82 = dma.hbm_to_vmem [thread:$0]  %s6, 16, %s80, [#allocation10]
    $region29: #{tpu_custom_call.1} parent=1 // pred_fallthru
      _
    // Predicated region
    $region30: #{tpu_custom_call.1} parent=1 // pred_check
      _
    $region31: #{tpu_custom_call.1} parent=1 // pred_check_branch
      %84 = sbr.rel (0) target = $region33
    $region32: #{tpu_custom_call.1} parent=1 // pred_region
      _
    $region33: #{tpu_custom_call.1} parent=1 // pred_fallthru
      _
    // Predicated region
    $region34: #{tpu_custom_call.1} parent=1 // pred_check
      _
    $region35: #{tpu_custom_call.1} parent=1 // pred_check_branch
      %86 = sbr.rel (0) target = $region37
    $region36: #{tpu_custom_call.1} parent=1 // pred_region
      %s88 = ssub.s32 16, 16
      %89 = vsyncadd [#allocation13], %s88
      %s91 = sshll.u32 [#allocation12], 4
      %s92 = int_to_ptr.vmem [resolvable:$true] %s91
      %94 = dma.hbm_to_vmem [thread:$0]  %s8, 16, %s92, [#allocation13]
    $region37: #{tpu_custom_call.1} parent=1 // pred_fallthru
      _
    // Predicated region
    $region38: #{tpu_custom_call.1} parent=1 // pred_check
      _
    $region39: #{tpu_custom_call.1} parent=1 // pred_check_branch
      %96 = sbr.rel (0) target = $region41
    $region40: #{tpu_custom_call.1} parent=1 // pred_region
      %s98 = ssub.s32 32, 32
      %99 = vsyncadd [#allocation13], %s98
      %s101 = sshll.u32 [#allocation14], 4
      %s102 = int_to_ptr.vmem [resolvable:$true] %s101
      %104 = dma.hbm_to_vmem [thread:$0]  %s9, 32, %s102, [#allocation13]
    $region41: #{tpu_custom_call.1} parent=1 // pred_fallthru
      _
    // Predicated region
    $region42: #{tpu_custom_call.1} parent=1 // pred_check
      _
    $region43: #{tpu_custom_call.1} parent=1 // pred_check_branch
      %106 = sbr.rel (0) target = $region45
    $region44: #{tpu_custom_call.1} parent=1 // pred_region
      %s108 = ssub.s32 16, 16
      %109 = vsyncadd [#allocation16], %s108
      %s111 = sshll.u32 [#allocation15], 4
      %s112 = int_to_ptr.vmem [resolvable:$true] %s111
      %114 = dma.hbm_to_vmem [thread:$0]  %s10, 16, %s112, [#allocation16]
    $region45: #{tpu_custom_call.1} parent=1 // pred_fallthru
      _
    // Predicated region
    $region46: #{tpu_custom_call.1} parent=1 // pred_check
      _
    $region47: #{tpu_custom_call.1} parent=1 // pred_check_branch
      %116 = sbr.rel (0) target = $region49
    $region48: #{tpu_custom_call.1} parent=1 // pred_region
      _
    $region49: #{tpu_custom_call.1} parent=1 // pred_fallthru
      _
    // Predicated region
    $region50: #{tpu_custom_call.1} parent=1 // pred_check
      _
    $region51: #{tpu_custom_call.1} parent=1 // pred_check_branch
      %118 = sbr.rel (0) target = $region53
    $region52: #{tpu_custom_call.1} parent=1 // pred_region
      _
    $region53: #{tpu_custom_call.1} parent=1 // pred_fallthru
      _
    // Predicated region
    $region54: #{tpu_custom_call.1} parent=1 // pred_check
      _
    $region55: #{tpu_custom_call.1} parent=1 // pred_check_branch
      %120 = sbr.rel (0) target = $region57
    $region56: #{tpu_custom_call.1} parent=1 // pred_region
      _
    $region57: #{tpu_custom_call.1} parent=1 // pred_fallthru
      _
    // Predicated region
    $region58: #{tpu_custom_call.1} parent=1 // pred_check
      _
    $region59: #{tpu_custom_call.1} parent=1 // pred_check_branch
      %122 = sbr.rel (0) target = $region61
    $region60: #{tpu_custom_call.1} parent=1 // pred_region
      %123 = dma.done [#allocation4], 6144
    $region61: #{tpu_custom_call.1} parent=1 // pred_fallthru
      _
    // Predicated region
    $region62: #{tpu_custom_call.1} parent=1 // pred_check
      _
    $region63: #{tpu_custom_call.1} parent=1 // pred_check_branch
      %125 = sbr.rel (0) target = $region65
    $region64: #{tpu_custom_call.1} parent=1 // pred_region
      %126 = dma.done [#allocation7], 16
    $region65: #{tpu_custom_call.1} parent=1 // pred_fallthru
      _
    // Predicated region
    $region66: #{tpu_custom_call.1} parent=1 // pred_check
      _
    $region67: #{tpu_custom_call.1} parent=1 // pred_check_branch
      %128 = sbr.rel (0) target = $region69
    $region68: #{tpu_custom_call.1} parent=1 // pred_region
      %129 = dma.done [#allocation7], 6144
    $region69: #{tpu_custom_call.1} parent=1 // pred_fallthru
      _
    // Predicated region
    $region70: #{tpu_custom_call.1} parent=1 // pred_check
      _
    $region71: #{tpu_custom_call.1} parent=1 // pred_check_branch
      %131 = sbr.rel (0) target = $region73
    $region72: #{tpu_custom_call.1} parent=1 // pred_region
      %132 = dma.done [#allocation10], 16
    $region73: #{tpu_custom_call.1} parent=1 // pred_fallthru
      _
    // Predicated region
    $region74: #{tpu_custom_call.1} parent=1 // pred_check
      _
    $region75: #{tpu_custom_call.1} parent=1 // pred_check_branch
      %134 = sbr.rel (0) target = $region77
    $region76: #{tpu_custom_call.1} parent=1 // pred_region
      %135 = dma.done [#allocation10], 16
    $region77: #{tpu_custom_call.1} parent=1 // pred_fallthru
      _
    // Predicated region
    $region78: #{tpu_custom_call.1} parent=1 // pred_check
      _
    $region79: #{tpu_custom_call.1} parent=1 // pred_check_branch
      %137 = sbr.rel (0) target = $region81
    $region80: #{tpu_custom_call.1} parent=1 // pred_region
      %138 = dma.done [#allocation13], 16
    $region81: #{tpu_custom_call.1} parent=1 // pred_fallthru
      _
    // Predicated region
    $region82: #{tpu_custom_call.1} parent=1 // pred_check
      _
    $region83: #{tpu_custom_call.1} parent=1 // pred_check_branch
      %140 = sbr.rel (0) target = $region85
    $region84: #{tpu_custom_call.1} parent=1 // pred_region
      %141 = dma.done [#allocation13], 32
    $region85: #{tpu_custom_call.1} parent=1 // pred_fallthru
      _
    // Predicated region
    $region86: #{tpu_custom_call.1} parent=1 // pred_check
      _
    $region87: #{tpu_custom_call.1} parent=1 // pred_check_branch
      %143 = sbr.rel (0) target = $region89
    $region88: #{tpu_custom_call.1} parent=1 // pred_region
      %144 = dma.done [#allocation16], 16
    $region89: #{tpu_custom_call.1} parent=1 // pred_fallthru
      _
    %145 = vst [vmem:[#allocation2] sm:$0xff] 0.0
    %146 = vst [vmem:[#allocation2 + $0x18] sm:$0xff] 0.0
    %147 = vst [vmem:[#allocation2 + $0x30] sm:$0xff] 0.0
    %v148 = vld [vmem:[%s0] sm:$0xff]
    %v149 = vld [vmem:[%s0 + $0x8] sm:$0xff]
    %150 = vst [vmem:[#allocation2 + $0x8] sm:$0xff] %v148
    %151 = vst [vmem:[#allocation2 + $0x10] sm:$0xff] %v149
    %v152 = vld [vmem:[%s0 + $0x10] sm:$0xff]
    %v153 = vld [vmem:[%s0 + $0x18] sm:$0xff]
    %154 = vst [vmem:[#allocation2 + $0x20] sm:$0xff] %v152
    %155 = vst [vmem:[#allocation2 + $0x28] sm:$0xff] %v153
    %v156 = vld [vmem:[#allocation2] sm:$0xff]
    %v157 = vld [vmem:[#allocation2 + $0x8] sm:$0xff]
    %v158 = vld [vmem:[#allocation2 + $0x10] sm:$0xff]
    %v159 = vld [vmem:[#allocation2 + $0x18] sm:$0xff]
    %v160 = vld [vmem:[#allocation2 + $0x20] sm:$0xff]
    %v161 = vld [vmem:[#allocation2 + $0x28] sm:$0xff]
    %v162 = vld [vmem:[#allocation2 + $0x30] sm:$0xff]
    %v163 = vld [vmem:[#allocation3] sm:$0xff]
    %v164 = vld [vmem:[#allocation3 + $0x8] sm:$0xff]
    %v165 = vld [vmem:[#allocation3 + $0x10] sm:$0xff]
    %v166 = vld [vmem:[#allocation3 + $0x18] sm:$0xff]
    %v167 = vld [vmem:[#allocation3 + $0x20] sm:$0xff]
    %v168 = vld [vmem:[#allocation3 + $0x28] sm:$0xff]
    %v169 = vld [vmem:[#allocation3 + $0x30] sm:$0xff]
    %v170 = vld [vmem:[#allocation3 + $0x38] sm:$0xff]
    %v171 = vld [vmem:[#allocation3 + $0x40] sm:$0xff]
    %v172 = vld [vmem:[#allocation3 + $0x48] sm:$0xff]
    %v173 = vld [vmem:[#allocation3 + $0x50] sm:$0xff]
    %v174 = vld [vmem:[#allocation3 + $0x58] sm:$0xff]
    %v175 = vld [vmem:[#allocation3 + $0x60] sm:$0xff]
    %v176 = vld [vmem:[#allocation3 + $0x68] sm:$0xff]
    %v177 = vld [vmem:[#allocation3 + $0x70] sm:$0xff]
    %v178 = vld [vmem:[#allocation3 + $0x78] sm:$0xff]
    %179 = vmatprep.subr.mxu0 0.0
    %180 = vmatpush1.msra.mxu0 %v178
    %181 = vmatprep.subr.mxu0 0.0
    %182 = vmatpush1.msra.mxu0 %v177
    %183 = vmatprep.subr.mxu0 0.0
    %184 = vmatpush1.msra.mxu0 %v176
    %185 = vmatprep.subr.mxu0 0.0
    %186 = vmatpush1.msra.mxu0 %v175
    %187 = vmatprep.subr.mxu0 0.0
    %188 = vmatpush1.msra.mxu0 %v174
    %189 = vmatprep.subr.mxu0 0.0
    %190 = vmatpush1.msra.mxu0 %v173
    %191 = vmatprep.subr.mxu0 0.0
    %192 = vmatpush1.msra.mxu0 %v172
    %193 = vmatprep.subr.mxu0 0.0
    %194 = vmatpush1.msra.mxu0 %v171
    %195 = vmatprep.subr.mxu0 0.0
    %196 = vmatpush1.msra.mxu0 %v170
    %197 = vmatprep.subr.mxu0 0.0
    %198 = vmatpush1.msra.mxu0 %v169
    %199 = vmatprep.subr.mxu0 0.0
    %200 = vmatpush1.msra.mxu0 %v168
    %201 = vmatprep.subr.mxu0 0.0
    %202 = vmatpush1.msra.mxu0 %v167
    %203 = vmatprep.subr.mxu0 0.0
    %204 = vmatpush1.msra.mxu0 %v166
    %205 = vmatprep.subr.mxu0 0.0
    %206 = vmatpush1.msra.mxu0 %v165
    %207 = vmatprep.subr.mxu0 0.0
    %208 = vmatpush1.msra.mxu0 %v164
    %209 = vmatprep.subr.mxu0 0.0
    %210 = vmatpush1.msra.mxu0 %v163
    %211 = vmatprep.subr.mxu0 0.0
    %212 = vmatpush2.msra.mxu0 0.0
    %213 = vmatprep.subr.mxu0 0.0
    %214 = vmatpush2.msra.mxu0 0.0
    %215 = vmatprep.subr.mxu0 0.0
    %216 = vmatpush2.msra.mxu0 0.0
    %217 = vmatprep.subr.mxu0 0.0
    %218 = vmatpush2.msra.mxu0 0.0
    %219 = vmatprep.subr.mxu0 0.0
    %220 = vmatpush2.msra.mxu0 0.0
    %221 = vmatprep.subr.mxu0 0.0
    %222 = vmatpush2.msra.mxu0 0.0
    %223 = vmatprep.subr.mxu0 0.0
    %224 = vmatpush2.msra.mxu0 0.0
    %225 = vmatprep.subr.mxu0 0.0
    %226 = vmatpush2.msra.mxu0 0.0
    %227 = vmatprep.subr.mxu0 0.0
    %228 = vmatpush2.msra.mxu0 0.0
    %229 = vmatprep.subr.mxu0 0.0
    %230 = vmatpush2.msra.mxu0 0.0
    %231 = vmatprep.subr.mxu0 0.0
    %232 = vmatpush2.msra.mxu0 0.0
    %233 = vmatprep.subr.mxu0 0.0
    %234 = vmatpush2.msra.mxu0 0.0
    %235 = vmatprep.subr.mxu0 0.0
    %236 = vmatpush2.msra.mxu0 0.0
    %237 = vmatprep.subr.mxu0 0.0
    %238 = vmatpush2.msra.mxu0 0.0
    %239 = vmatprep.subr.mxu0 0.0
    %240 = vmatpush2.msra.mxu0 0.0
    %241 = vmatprep.subr.mxu0 0.0
    %242 = vmatpush2.msra.mxu0 0.0
    %243 = vmatprep.mubr.f32.mxu0 0.0
    %244 = vmatmul.mubr.f32.gmra.mxu0 %v156
    %v245 = vpop.f32.mrf.mxu0
    %v246 = vadd.f32 0.0, %v245
    %v247 = vpop.f32.mrf.mxu0
    %248 = vmatprep.mubr.f32.mxu0 0.0
    %249 = vmatmul.mubr.f32.gmra.mxu0 %v157
    %v250 = vpop.f32.mrf.mxu0
    %v251 = vadd.f32 0.0, %v250
    %v252 = vpop.f32.mrf.mxu0
    %253 = vmatprep.mubr.f32.mxu0 0.0
    %254 = vmatmul.mubr.f32.gmra.mxu0 %v158
    %v255 = vpop.f32.mrf.mxu0
    %v256 = vadd.f32 0.0, %v255
    %v257 = vpop.f32.mrf.mxu0
    %258 = vmatprep.mubr.f32.mxu0 0.0
    %259 = vmatmul.mubr.f32.gmra.mxu0 %v159
    %v260 = vpop.f32.mrf.mxu0
    %v261 = vadd.f32 0.0, %v260
    %v262 = vpop.f32.mrf.mxu0
    %263 = vmatprep.mubr.f32.mxu0 0.0
    %264 = vmatmul.mubr.f32.gmra.mxu0 %v160
    %v265 = vpop.f32.mrf.mxu0
    %v266 = vadd.f32 0.0, %v265
    %v267 = vpop.f32.mrf.mxu0
    %268 = vmatprep.mubr.f32.mxu0 0.0
    %269 = vmatmul.mubr.f32.gmra.mxu0 %v161
    %v270 = vpop.f32.mrf.mxu0
    %v271 = vadd.f32 0.0, %v270
    %v272 = vpop.f32.mrf.mxu0
    %273 = vmatprep.mubr.f32.mxu0 0.0
    %274 = vmatmul.mubr.f32.gmra.mxu0 %v162
    %v275 = vpop.f32.mrf.mxu0
    %v276 = vpop.f32.mrf.mxu0
    %277 = vdwg.mxu0
    %s278 = scalar_lea.vmem [#allocation3], 128
    %v279 = vld [vmem:[%s278] sm:$0xff]
    %v280 = vld [vmem:[%s278 + $0x8] sm:$0xff]
    %v281 = vld [vmem:[%s278 + $0x10] sm:$0xff]
    %v282 = vld [vmem:[%s278 + $0x18] sm:$0xff]
    %v283 = vld [vmem:[%s278 + $0x20] sm:$0xff]
    %v284 = vld [vmem:[%s278 + $0x28] sm:$0xff]
    %v285 = vld [vmem:[%s278 + $0x30] sm:$0xff]
    %v286 = vld [vmem:[%s278 + $0x38] sm:$0xff]
    %v287 = vld [vmem:[%s278 + $0x40] sm:$0xff]
    %v288 = vld [vmem:[%s278 + $0x48] sm:$0xff]
    %v289 = vld [vmem:[%s278 + $0x50] sm:$0xff]
    %v290 = vld [vmem:[%s278 + $0x58] sm:$0xff]
    %v291 = vld [vmem:[%s278 + $0x60] sm:$0xff]
    %v292 = vld [vmem:[%s278 + $0x68] sm:$0xff]
    %v293 = vld [vmem:[%s278 + $0x70] sm:$0xff]
    %v294 = vld [vmem:[%s278 + $0x78] sm:$0xff]
    %295 = vmatprep.subr.mxu0 0.0
    %296 = vmatpush1.msra.mxu0 %v294
    %297 = vmatprep.subr.mxu0 0.0
    %298 = vmatpush1.msra.mxu0 %v293
    %299 = vmatprep.subr.mxu0 0.0
    %300 = vmatpush1.msra.mxu0 %v292
    %301 = vmatprep.subr.mxu0 0.0
    %302 = vmatpush1.msra.mxu0 %v291
    %303 = vmatprep.subr.mxu0 0.0
    %304 = vmatpush1.msra.mxu0 %v290
    %305 = vmatprep.subr.mxu0 0.0
    %306 = vmatpush1.msra.mxu0 %v289
    %307 = vmatprep.subr.mxu0 0.0
    %308 = vmatpush1.msra.mxu0 %v288
    %309 = vmatprep.subr.mxu0 0.0
    %310 = vmatpush1.msra.mxu0 %v287
    %311 = vmatprep.subr.mxu0 0.0
    %312 = vmatpush1.msra.mxu0 %v286
    %313 = vmatprep.subr.mxu0 0.0
    %314 = vmatpush1.msra.mxu0 %v285
    %315 = vmatprep.subr.mxu0 0.0
    %316 = vmatpush1.msra.mxu0 %v284
    %317 = vmatprep.subr.mxu0 0.0
    %318 = vmatpush1.msra.mxu0 %v283
    %319 = vmatprep.subr.mxu0 0.0
    %320 = vmatpush1.msra.mxu0 %v282
    %321 = vmatprep.subr.mxu0 0.0
    %322 = vmatpush1.msra.mxu0 %v281
    %323 = vmatprep.subr.mxu0 0.0
    %324 = vmatpush1.msra.mxu0 %v280
    %325 = vmatprep.subr.mxu0 0.0
    %326 = vmatpush1.msra.mxu0 %v279
    %327 = vmatprep.subr.mxu0 0.0
    %328 = vmatpush2.msra.mxu0 0.0
    %329 = vmatprep.subr.mxu0 0.0
    %330 = vmatpush2.msra.mxu0 0.0
    %331 = vmatprep.subr.mxu0 0.0
    %332 = vmatpush2.msra.mxu0 0.0
    %333 = vmatprep.subr.mxu0 0.0
    %334 = vmatpush2.msra.mxu0 0.0
    %335 = vmatprep.subr.mxu0 0.0
    %336 = vmatpush2.msra.mxu0 0.0
    %337 = vmatprep.subr.mxu0 0.0
    %338 = vmatpush2.msra.mxu0 0.0
    %339 = vmatprep.subr.mxu0 0.0
    %340 = vmatpush2.msra.mxu0 0.0
    %341 = vmatprep.subr.mxu0 0.0
    %342 = vmatpush2.msra.mxu0 0.0
    %343 = vmatprep.subr.mxu0 0.0
    %344 = vmatpush2.msra.mxu0 0.0
    %345 = vmatprep.subr.mxu0 0.0
    %346 = vmatpush2.msra.mxu0 0.0
    %347 = vmatprep.subr.mxu0 0.0
    %348 = vmatpush2.msra.mxu0 0.0
    %349 = vmatprep.subr.mxu0 0.0
    %350 = vmatpush2.msra.mxu0 0.0
    %351 = vmatprep.subr.mxu0 0.0
    %352 = vmatpush2.msra.mxu0 0.0
    %353 = vmatprep.subr.mxu0 0.0
    %354 = vmatpush2.msra.mxu0 0.0
    %355 = vmatprep.subr.mxu0 0.0
    %356 = vmatpush2.msra.mxu0 0.0
    %357 = vmatprep.subr.mxu0 0.0
    %358 = vmatpush2.msra.mxu0 0.0
    %359 = vmatprep.mubr.f32.mxu0 0.0
    %360 = vmatmul.mubr.f32.gmra.mxu0 %v156
    %v361 = vpop.f32.mrf.mxu0
    %v362 = vpop.f32.mrf.mxu0
    %363 = vmatprep.mubr.f32.mxu0 0.0
    %364 = vmatmul.mubr.f32.gmra.mxu0 %v157
    %v365 = vpop.f32.mrf.mxu0
    %v366 = vadd.f32 0.0, %v365
    %v367 = vpop.f32.mrf.mxu0
    %368 = vmatprep.mubr.f32.mxu0 0.0
    %369 = vmatmul.mubr.f32.gmra.mxu0 %v158
    %v370 = vpop.f32.mrf.mxu0
    %v371 = vadd.f32 0.0, %v370
    %v372 = vpop.f32.mrf.mxu0
    %373 = vmatprep.mubr.f32.mxu0 0.0
    %374 = vmatmul.mubr.f32.gmra.mxu0 %v159
    %v375 = vpop.f32.mrf.mxu0
    %v376 = vpop.f32.mrf.mxu0
    %377 = vmatprep.mubr.f32.mxu0 0.0
    %378 = vmatmul.mubr.f32.gmra.mxu0 %v160
    %v379 = vpop.f32.mrf.mxu0
    %v380 = vadd.f32 0.0, %v379
    %v381 = vpop.f32.mrf.mxu0
    %382 = vmatprep.mubr.f32.mxu0 0.0
    %383 = vmatmul.mubr.f32.gmra.mxu0 %v161
    %v384 = vpop.f32.mrf.mxu0
    %v385 = vadd.f32 0.0, %v384
    %v386 = vpop.f32.mrf.mxu0
    %387 = vmatprep.mubr.f32.mxu0 0.0
    %388 = vmatmul.mubr.f32.gmra.mxu0 %v162
    %v389 = vpop.f32.mrf.mxu0
    %v390 = vpop.f32.mrf.mxu0
    %391 = vdwg.mxu0
    %s392 = scalar_lea.vmem [#allocation3], 256
    %v393 = vld [vmem:[%s392] sm:$0xff]
    %v394 = vld [vmem:[%s392 + $0x8] sm:$0xff]
    %v395 = vld [vmem:[%s392 + $0x10] sm:$0xff]
    %v396 = vld [vmem:[%s392 + $0x18] sm:$0xff]
    %v397 = vld [vmem:[%s392 + $0x20] sm:$0xff]
    %v398 = vld [vmem:[%s392 + $0x28] sm:$0xff]
    %v399 = vld [vmem:[%s392 + $0x30] sm:$0xff]
    %v400 = vld [vmem:[%s392 + $0x38] sm:$0xff]
    %v401 = vld [vmem:[%s392 + $0x40] sm:$0xff]
    %v402 = vld [vmem:[%s392 + $0x48] sm:$0xff]
    %v403 = vld [vmem:[%s392 + $0x50] sm:$0xff]
    %v404 = vld [vmem:[%s392 + $0x58] sm:$0xff]
    %v405 = vld [vmem:[%s392 + $0x60] sm:$0xff]
    %v406 = vld [vmem:[%s392 + $0x68] sm:$0xff]
    %v407 = vld [vmem:[%s392 + $0x70] sm:$0xff]
    %v408 = vld [vmem:[%s392 + $0x78] sm:$0xff]
    %409 = vmatprep.subr.mxu0 0.0
    %410 = vmatpush1.msra.mxu0 %v408
    %411 = vmatprep.subr.mxu0 0.0
    %412 = vmatpush1.msra.mxu0 %v407
    %413 = vmatprep.subr.mxu0 0.0
    %414 = vmatpush1.msra.mxu0 %v406
    %415 = vmatprep.subr.mxu0 0.0
    %416 = vmatpush1.msra.mxu0 %v405
    %417 = vmatprep.subr.mxu0 0.0
    %418 = vmatpush1.msra.mxu0 %v404
    %419 = vmatprep.subr.mxu0 0.0
    %420 = vmatpush1.msra.mxu0 %v403
    %421 = vmatprep.subr.mxu0 0.0
    %422 = vmatpush1.msra.mxu0 %v402
    %423 = vmatprep.subr.mxu0 0.0
    %424 = vmatpush1.msra.mxu0 %v401
    %425 = vmatprep.subr.mxu0 0.0
    %426 = vmatpush1.msra.mxu0 %v400
    %427 = vmatprep.subr.mxu0 0.0
    %428 = vmatpush1.msra.mxu0 %v399
    %429 = vmatprep.subr.mxu0 0.0
    %430 = vmatpush1.msra.mxu0 %v398
    %431 = vmatprep.subr.mxu0 0.0
    %432 = vmatpush1.msra.mxu0 %v397
    %433 = vmatprep.subr.mxu0 0.0
    %434 = vmatpush1.msra.mxu0 %v396
    %435 = vmatprep.subr.mxu0 0.0
    %436 = vmatpush1.msra.mxu0 %v395
    %437 = vmatprep.subr.mxu0 0.0
    %438 = vmatpush1.msra.mxu0 %v394
    %439 = vmatprep.subr.mxu0 0.0
    %440 = vmatpush1.msra.mxu0 %v393
    %441 = vmatprep.subr.mxu0 0.0
    %442 = vmatpush2.msra.mxu0 0.0
    %443 = vmatprep.subr.mxu0 0.0
    %444 = vmatpush2.msra.mxu0 0.0
    %445 = vmatprep.subr.mxu0 0.0
    %446 = vmatpush2.msra.mxu0 0.0
    %447 = vmatprep.subr.mxu0 0.0
    %448 = vmatpush2.msra.mxu0 0.0
    %449 = vmatprep.subr.mxu0 0.0
    %450 = vmatpush2.msra.mxu0 0.0
    %451 = vmatprep.subr.mxu0 0.0
    %452 = vmatpush2.msra.mxu0 0.0
    %453 = vmatprep.subr.mxu0 0.0
    %454 = vmatpush2.msra.mxu0 0.0
    %455 = vmatprep.subr.mxu0 0.0
    %456 = vmatpush2.msra.mxu0 0.0
    %457 = vmatprep.subr.mxu0 0.0
    %458 = vmatpush2.msra.mxu0 0.0
    %459 = vmatprep.subr.mxu0 0.0
    %460 = vmatpush2.msra.mxu0 0.0
    %461 = vmatprep.subr.mxu0 0.0
    %462 = vmatpush2.msra.mxu0 0.0
    %463 = vmatprep.subr.mxu0 0.0
    %464 = vmatpush2.msra.mxu0 0.0
    %465 = vmatprep.subr.mxu0 0.0
    %466 = vmatpush2.msra.mxu0 0.0
    %467 = vmatprep.subr.mxu0 0.0
    %468 = vmatpush2.msra.mxu0 0.0
    %469 = vmatprep.subr.mxu0 0.0
    %470 = vmatpush2.msra.mxu0 0.0
    %471 = vmatprep.subr.mxu0 0.0
    %472 = vmatpush2.msra.mxu0 0.0
    %473 = vmatprep.mubr.f32.mxu0 0.0
    %474 = vmatmul.mubr.f32.gmra.mxu0 %v156
    %v475 = vpop.f32.mrf.mxu0
    %v476 = vpop.f32.mrf.mxu0
    %477 = vmatprep.mubr.f32.mxu0 0.0
    %478 = vmatmul.mubr.f32.gmra.mxu0 %v157
    %v479 = vpop.f32.mrf.mxu0
    %v480 = vadd.f32 0.0, %v479
    %v481 = vpop.f32.mrf.mxu0
    %482 = vmatprep.mubr.f32.mxu0 0.0
    %483 = vmatmul.mubr.f32.gmra.mxu0 %v158
    %v484 = vpop.f32.mrf.mxu0
    %v485 = vadd.f32 0.0, %v484
    %v486 = vpop.f32.mrf.mxu0
    %487 = vmatprep.mubr.f32.mxu0 0.0
    %488 = vmatmul.mubr.f32.gmra.mxu0 %v159
    %v489 = vpop.f32.mrf.mxu0
    %v490 = vadd.f32 0.0, %v489
    %v491 = vpop.f32.mrf.mxu0
    %492 = vmatprep.mubr.f32.mxu0 0.0
    %493 = vmatmul.mubr.f32.gmra.mxu0 %v160
    %v494 = vpop.f32.mrf.mxu0
    %v495 = vadd.f32 0.0, %v494
    %v496 = vpop.f32.mrf.mxu0
    %497 = vmatprep.mubr.f32.mxu0 0.0
    %498 = vmatmul.mubr.f32.gmra.mxu0 %v161
    %v499 = vpop.f32.mrf.mxu0
    %v500 = vadd.f32 0.0, %v499
    %v501 = vpop.f32.mrf.mxu0
    %502 = vmatprep.mubr.f32.mxu0 0.0
    %503 = vmatmul.mubr.f32.gmra.mxu0 %v162
    %v504 = vpop.f32.mrf.mxu0
    %v505 = vadd.f32 0.0, %v504
    %v506 = vpop.f32.mrf.mxu0
    %507 = vdwg.mxu0
    %vm510 = vcmask 1046528
    %v511 = vrot.slane %v366, 1
    %v512 = vrot.slane %v371, 1
    %v513 = vsel %vm510, %v511, %v512
    %v517 = vadd.f32 %v246, %v511
    %v518 = vadd.f32 %v251, %v513
    %v519 = vadd.f32 %v256, %v512
    %vm523 = vcmask 1045504
    %v524 = vrot.slane %v480, 2
    %v525 = vrot.slane %v485, 2
    %v526 = vsel %vm523, %v524, %v525
    %v527 = vrot.slane %v490, 2
    %v528 = vsel %vm523, %v525, %v527
    %v532 = vadd.f32 %v517, %v524
    %v533 = vadd.f32 %v518, %v526
    %v534 = vadd.f32 %v519, %v528
    %vm538 = vcmask 1040384
    %v539 = vrot.slane %v532, 7
    %v540 = vrot.slane %v533, 7
    %v541 = vsel %vm538, %v539, %v540
    %v542 = vrot.slane %v534, 7
    %v543 = vsel %vm538, %v540, %v542
    %v546 = vadd.f32 %v541, %v543
    %v547 = vrot.slane %v546, 4
    %v548 = vadd.f32 %v546, %v547
    %v549 = vrot.slane %v548, 2
    %v550 = vadd.f32 %v548, %v549
    %v551 = vrot.slane %v550, 1
    %v552 = vadd.f32 %v550, %v551
    %v553 = vadd.f32 %v552, 0.0
    %v554 = vmul.f32 %v532, %v532
    %v555 = vmul.f32 %v533, %v533
    %v556 = vmul.f32 %v534, %v534
    %v560 = vrot.slane %v554, 7
    %v561 = vrot.slane %v555, 7
    %v562 = vsel %vm538, %v560, %v561
    %v563 = vrot.slane %v556, 7
    %v564 = vsel %vm538, %v561, %v563
    %v567 = vadd.f32 %v562, %v564
    %v568 = vrot.slane %v567, 4
    %v569 = vadd.f32 %v567, %v568
    %v570 = vrot.slane %v569, 2
    %v571 = vadd.f32 %v569, %v570
    %v572 = vrot.slane %v571, 1
    %v573 = vadd.f32 %v571, %v572
    %v574 = vadd.f32 %v573, 0.0
    %575 = vst [vmem:[#allocation2 + $0x1] sm:$0x80] %v532
    %576 = vst [vmem:[#allocation2 + $0x9] sm:$0xff] %v533
    %577 = vst [vmem:[#allocation2 + $0x11] sm:$0x7f] %v534
    %v580 = vrot.slane %v380, 1
    %v581 = vrot.slane %v385, 1
    %v582 = vsel %vm510, %v580, %v581
    %v586 = vadd.f32 %v261, %v580
    %v587 = vadd.f32 %v266, %v582
    %v588 = vadd.f32 %v271, %v581
    %v592 = vrot.slane %v495, 2
    %v593 = vrot.slane %v500, 2
    %v594 = vsel %vm523, %v592, %v593
    %v595 = vrot.slane %v505, 2
    %v596 = vsel %vm523, %v593, %v595
    %v600 = vadd.f32 %v586, %v592
    %v601 = vadd.f32 %v587, %v594
    %v602 = vadd.f32 %v588, %v596
    %v606 = vrot.slane %v600, 7
    %v607 = vrot.slane %v601, 7
    %v608 = vsel %vm538, %v606, %v607
    %v609 = vrot.slane %v602, 7
    %v610 = vsel %vm538, %v607, %v609
    %v613 = vadd.f32 %v608, %v610
    %v614 = vrot.slane %v613, 4
    %v615 = vadd.f32 %v613, %v614
    %v616 = vrot.slane %v615, 2
    %v617 = vadd.f32 %v615, %v616
    %v618 = vrot.slane %v617, 1
    %v619 = vadd.f32 %v617, %v618
    %v620 = vadd.f32 %v553, %v619
    %v621 = vmul.f32 %v600, %v600
    %v622 = vmul.f32 %v601, %v601
    %v623 = vmul.f32 %v602, %v602
    %v627 = vrot.slane %v621, 7
    %v628 = vrot.slane %v622, 7
    %v629 = vsel %vm538, %v627, %v628
    %v630 = vrot.slane %v623, 7
    %v631 = vsel %vm538, %v628, %v630
    %v634 = vadd.f32 %v629, %v631
    %v635 = vrot.slane %v634, 4
    %v636 = vadd.f32 %v634, %v635
    %v637 = vrot.slane %v636, 2
    %v638 = vadd.f32 %v636, %v637
    %v639 = vrot.slane %v638, 1
    %v640 = vadd.f32 %v638, %v639
    %v641 = vadd.f32 %v574, %v640
    %642 = vst [vmem:[#allocation2 + $0x19] sm:$0x80] %v600
    %643 = vst [vmem:[#allocation2 + $0x21] sm:$0xff] %v601
    %644 = vst [vmem:[#allocation2 + $0x29] sm:$0x7f] %v602
    %v645 = vsel %vm538, %v620, %v641
    %v646 = vld [vmem:[%s11] sm:$0xff]
    %v647 = vld [vmem:[%s11 + $0x8] sm:$0xff]
    %v648 = vld [vmem:[%s11 + $0x10] sm:$0xff]
    %v649 = vld [vmem:[%s11 + $0x18] sm:$0xff]
    %v650 = vld [vmem:[%s11 + $0x20] sm:$0xff]
    %v651 = vld [vmem:[%s11 + $0x28] sm:$0xff]
    %v652 = vld [vmem:[%s11 + $0x30] sm:$0xff]
    %v653 = vld [vmem:[%s11 + $0x38] sm:$0xff]
    %v654 = vld [vmem:[%s11 + $0x40] sm:$0xff]
    %v655 = vld [vmem:[%s11 + $0x48] sm:$0xff]
    %v656 = vld [vmem:[%s11 + $0x50] sm:$0xff]
    %v657 = vld [vmem:[%s11 + $0x58] sm:$0xff]
    %v658 = vld [vmem:[%s11 + $0x60] sm:$0xff]
    %v659 = vld [vmem:[%s11 + $0x68] sm:$0xff]
    %v660 = vld [vmem:[%s11 + $0x70] sm:$0xff]
    %v661 = vld [vmem:[%s11 + $0x78] sm:$0xff]
    %662 = vmatprep.subr.mxu0 0.0
    %663 = vmatpush1.msra.mxu0 %v661
    %664 = vmatprep.subr.mxu0 0.0
    %665 = vmatpush1.msra.mxu0 %v660
    %666 = vmatprep.subr.mxu0 0.0
    %667 = vmatpush1.msra.mxu0 %v659
    %668 = vmatprep.subr.mxu0 0.0
    %669 = vmatpush1.msra.mxu0 %v658
    %670 = vmatprep.subr.mxu0 0.0
    %671 = vmatpush1.msra.mxu0 %v657
    %672 = vmatprep.subr.mxu0 0.0
    %673 = vmatpush1.msra.mxu0 %v656
    %674 = vmatprep.subr.mxu0 0.0
    %675 = vmatpush1.msra.mxu0 %v655
    %676 = vmatprep.subr.mxu0 0.0
    %677 = vmatpush1.msra.mxu0 %v654
    %678 = vmatprep.subr.mxu0 0.0
    %679 = vmatpush1.msra.mxu0 %v653
    %680 = vmatprep.subr.mxu0 0.0
    %681 = vmatpush1.msra.mxu0 %v652
    %682 = vmatprep.subr.mxu0 0.0
    %683 = vmatpush1.msra.mxu0 %v651
    %684 = vmatprep.subr.mxu0 0.0
    %685 = vmatpush1.msra.mxu0 %v650
    %686 = vmatprep.subr.mxu0 0.0
    %687 = vmatpush1.msra.mxu0 %v649
    %688 = vmatprep.subr.mxu0 0.0
    %689 = vmatpush1.msra.mxu0 %v648
    %690 = vmatprep.subr.mxu0 0.0
    %691 = vmatpush1.msra.mxu0 %v647
    %692 = vmatprep.subr.mxu0 0.0
    %693 = vmatpush1.msra.mxu0 %v646
    %694 = vmatprep.subr.mxu0 0.0
    %695 = vmatpush2.msra.mxu0 0.0
    %696 = vmatprep.subr.mxu0 0.0
    %697 = vmatpush2.msra.mxu0 0.0
    %698 = vmatprep.subr.mxu0 0.0
    %699 = vmatpush2.msra.mxu0 0.0
    %700 = vmatprep.subr.mxu0 0.0
    %701 = vmatpush2.msra.mxu0 0.0
    %702 = vmatprep.subr.mxu0 0.0
    %703 = vmatpush2.msra.mxu0 0.0
    %704 = vmatprep.subr.mxu0 0.0
    %705 = vmatpush2.msra.mxu0 0.0
    %706 = vmatprep.subr.mxu0 0.0
    %707 = vmatpush2.msra.mxu0 0.0
    %708 = vmatprep.subr.mxu0 0.0
    %709 = vmatpush2.msra.mxu0 0.0
    %710 = vmatprep.subr.mxu0 0.0
    %711 = vmatpush2.msra.mxu0 0.0
    %712 = vmatprep.subr.mxu0 0.0
    %713 = vmatpush2.msra.mxu0 0.0
    %714 = vmatprep.subr.mxu0 0.0
    %715 = vmatpush2.msra.mxu0 0.0
    %716 = vmatprep.subr.mxu0 0.0
    %717 = vmatpush2.msra.mxu0 0.0
    %718 = vmatprep.subr.mxu0 0.0
    %719 = vmatpush2.msra.mxu0 0.0
    %720 = vmatprep.subr.mxu0 0.0
    %721 = vmatpush2.msra.mxu0 0.0
    %722 = vmatprep.subr.mxu0 0.0
    %723 = vmatpush2.msra.mxu0 0.0
    %724 = vmatprep.subr.mxu0 0.0
    %725 = vmatpush2.msra.mxu0 0.0
    %726 = vmatprep.mubr.f32.mxu0 0.0
    %727 = vmatmul.mubr.f32.gmra.mxu0 %v645
    %v728 = vpop.f32.mrf.mxu0
    %v729 = vadd.f32 0.0, %v728
    %v730 = vpop.f32.mrf.mxu0
    %731 = vdwg.mxu0
    %v732 = vmul.f32 %v729, 0.001953125
    %v733 = vmul.f32 %v732, %v732
    %v735 = vrot.slane %v733, 7
    %v737 = vsub.f32 %v732, %v735
    %v738 = vadd.f32 %v737, 1e-05
    %v739 = vrsqrt.pop %v738
    %v740 = vld [vmem:[%s2] sm:$0x1]
    %v742 = vlaneseq
    %v743 = vshrl.u32 %v742, 7
    %v744 = vsub.s32 0, %v743
    %v745 = vrot.slane %v740, %v744
    %v747 = vmul.f32 %v739, %v745
    %v748 = vld [vmem:[#allocation6] sm:$0x1]
    %v750 = vrot.slane %v747, 1
    %v752 = vmul.f32 %v732, %v750
    %v753 = vsub.f32 %v748, %v752
    %v754 = vld [vmem:[#allocation2 + $0x8] sm:$0xff]
    %v755 = vld [vmem:[#allocation2 + $0x10] sm:$0xff]
    %v756 = vlaneseq
    %v757 = vshrl.u32 %v756, 7
    %v758 = vsub.s32 1, %v757
    %v759 = vrot.slane %v747, %v758
    %v760 = vmul.f32 %v754, %v759
    %v761 = vmul.f32 %v755, %v759
    %v763 = vlaneseq
    %v764 = vshrl.u32 %v763, 7
    %v765 = vsub.s32 0, %v764
    %v766 = vrot.slane %v753, %v765
    %v768 = vadd.f32 %v760, %v766
    %v769 = vadd.f32 %v761, %v766
    %v770 = vmul.f32 %v768, 1.442695
    %v771 = vpow.pop %v770
    %v772 = vmul.f32 %v769, 1.442695
    %v773 = vpow.pop %v772
    %v774 = vadd.f32 %v771, 1.0
    %v775 = vadd.f32 %v773, 1.0
    %v776 = vmul.f32 %v774, %v774
    %v777 = vmul.f32 %v775, %v775
    %v778 = vadd.f32 %v776, 1.0
    %v779 = vadd.f32 %v777, 1.0
    %v780 = vrcp.pop %v778
    %v781 = vrcp.pop %v779
    %v782 = vmul.f32 %v780, 2.0
    %v783 = vmul.f32 %v781, 2.0
    %v784 = vsub.f32 1.0, %v782
    %v785 = vsub.f32 1.0, %v783
    %v786 = vmul.f32 %v768, %v784
    %v787 = vmul.f32 %v769, %v785
    %788 = vst [vmem:[#allocation2 + $0x8] sm:$0xff] %v786
    %789 = vst [vmem:[#allocation2 + $0x10] sm:$0xff] %v787
    %v790 = vld [vmem:[#allocation2 + $0x20] sm:$0xff]
    %v791 = vld [vmem:[#allocation2 + $0x28] sm:$0xff]
    %v792 = vmul.f32 %v790, %v759
    %v793 = vmul.f32 %v791, %v759
    %v794 = vadd.f32 %v792, %v766
    %v795 = vadd.f32 %v793, %v766
    %v796 = vmul.f32 %v794, 1.442695
    %v797 = vpow.pop %v796
    %v798 = vmul.f32 %v795, 1.442695
    %v799 = vpow.pop %v798
    %v800 = vadd.f32 %v797, 1.0
    %v801 = vadd.f32 %v799, 1.0
    %v802 = vmul.f32 %v800, %v800
    %v803 = vmul.f32 %v801, %v801
    %v804 = vadd.f32 %v802, 1.0
    %v805 = vadd.f32 %v803, 1.0
    %v806 = vrcp.pop %v804
    %v807 = vrcp.pop %v805
    %v808 = vmul.f32 %v806, 2.0
    %v809 = vmul.f32 %v807, 2.0
    %v810 = vsub.f32 1.0, %v808
    %v811 = vsub.f32 1.0, %v809
    %v812 = vmul.f32 %v794, %v810
    %v813 = vmul.f32 %v795, %v811
    %814 = vst [vmem:[#allocation2 + $0x20] sm:$0xff] %v812
    %815 = vst [vmem:[#allocation2 + $0x28] sm:$0xff] %v813
    %v816 = vld [vmem:[#allocation2] sm:$0xff]
    %v817 = vld [vmem:[#allocation2 + $0x8] sm:$0xff]
    %v818 = vld [vmem:[#allocation2 + $0x10] sm:$0xff]
    %v819 = vld [vmem:[#allocation2 + $0x18] sm:$0xff]
    %v820 = vld [vmem:[#allocation2 + $0x20] sm:$0xff]
    %v821 = vld [vmem:[#allocation2 + $0x28] sm:$0xff]
    %v822 = vld [vmem:[#allocation2 + $0x30] sm:$0xff]
    %v823 = vld [vmem:[#allocation8] sm:$0xff]
    %v824 = vld [vmem:[#allocation8 + $0x8] sm:$0xff]
    %v825 = vld [vmem:[#allocation8 + $0x10] sm:$0xff]
    %v826 = vld [vmem:[#allocation8 + $0x18] sm:$0xff]
    %v827 = vld [vmem:[#allocation8 + $0x20] sm:$0xff]
    %v828 = vld [vmem:[#allocation8 + $0x28] sm:$0xff]
    %v829 = vld [vmem:[#allocation8 + $0x30] sm:$0xff]
    %v830 = vld [vmem:[#allocation8 + $0x38] sm:$0xff]
    %v831 = vld [vmem:[#allocation8 + $0x40] sm:$0xff]
    %v832 = vld [vmem:[#allocation8 + $0x48] sm:$0xff]
    %v833 = vld [vmem:[#allocation8 + $0x50] sm:$0xff]
    %v834 = vld [vmem:[#allocation8 + $0x58] sm:$0xff]
    %v835 = vld [vmem:[#allocation8 + $0x60] sm:$0xff]
    %v836 = vld [vmem:[#allocation8 + $0x68] sm:$0xff]
    %v837 = vld [vmem:[#allocation8 + $0x70] sm:$0xff]
    %v838 = vld [vmem:[#allocation8 + $0x78] sm:$0xff]
    %839 = vmatprep.subr.mxu0 0.0
    %840 = vmatpush1.msra.mxu0 %v838
    %841 = vmatprep.subr.mxu0 0.0
    %842 = vmatpush1.msra.mxu0 %v837
    %843 = vmatprep.subr.mxu0 0.0
    %844 = vmatpush1.msra.mxu0 %v836
    %845 = vmatprep.subr.mxu0 0.0
    %846 = vmatpush1.msra.mxu0 %v835
    %847 = vmatprep.subr.mxu0 0.0
    %848 = vmatpush1.msra.mxu0 %v834
    %849 = vmatprep.subr.mxu0 0.0
    %850 = vmatpush1.msra.mxu0 %v833
    %851 = vmatprep.subr.mxu0 0.0
    %852 = vmatpush1.msra.mxu0 %v832
    %853 = vmatprep.subr.mxu0 0.0
    %854 = vmatpush1.msra.mxu0 %v831
    %855 = vmatprep.subr.mxu0 0.0
    %856 = vmatpush1.msra.mxu0 %v830
    %857 = vmatprep.subr.mxu0 0.0
    %858 = vmatpush1.msra.mxu0 %v829
    %859 = vmatprep.subr.mxu0 0.0
    %860 = vmatpush1.msra.mxu0 %v828
    %861 = vmatprep.subr.mxu0 0.0
    %862 = vmatpush1.msra.mxu0 %v827
    %863 = vmatprep.subr.mxu0 0.0
    %864 = vmatpush1.msra.mxu0 %v826
    %865 = vmatprep.subr.mxu0 0.0
    %866 = vmatpush1.msra.mxu0 %v825
    %867 = vmatprep.subr.mxu0 0.0
    %868 = vmatpush1.msra.mxu0 %v824
    %869 = vmatprep.subr.mxu0 0.0
    %870 = vmatpush1.msra.mxu0 %v823
    %871 = vmatprep.subr.mxu0 0.0
    %872 = vmatpush2.msra.mxu0 0.0
    %873 = vmatprep.subr.mxu0 0.0
    %874 = vmatpush2.msra.mxu0 0.0
    %875 = vmatprep.subr.mxu0 0.0
    %876 = vmatpush2.msra.mxu0 0.0
    %877 = vmatprep.subr.mxu0 0.0
    %878 = vmatpush2.msra.mxu0 0.0
    %879 = vmatprep.subr.mxu0 0.0
    %880 = vmatpush2.msra.mxu0 0.0
    %881 = vmatprep.subr.mxu0 0.0
    %882 = vmatpush2.msra.mxu0 0.0
    %883 = vmatprep.subr.mxu0 0.0
    %884 = vmatpush2.msra.mxu0 0.0
    %885 = vmatprep.subr.mxu0 0.0
    %886 = vmatpush2.msra.mxu0 0.0
    %887 = vmatprep.subr.mxu0 0.0
    %888 = vmatpush2.msra.mxu0 0.0
    %889 = vmatprep.subr.mxu0 0.0
    %890 = vmatpush2.msra.mxu0 0.0
    %891 = vmatprep.subr.mxu0 0.0
    %892 = vmatpush2.msra.mxu0 0.0
    %893 = vmatprep.subr.mxu0 0.0
    %894 = vmatpush2.msra.mxu0 0.0
    %895 = vmatprep.subr.mxu0 0.0
    %896 = vmatpush2.msra.mxu0 0.0
    %897 = vmatprep.subr.mxu0 0.0
    %898 = vmatpush2.msra.mxu0 0.0
    %899 = vmatprep.subr.mxu0 0.0
    %900 = vmatpush2.msra.mxu0 0.0
    %901 = vmatprep.subr.mxu0 0.0
    %902 = vmatpush2.msra.mxu0 0.0
    %903 = vmatprep.mubr.f32.mxu0 0.0
    %904 = vmatmul.mubr.f32.gmra.mxu0 %v816
    %v905 = vpop.f32.mrf.mxu0
    %v906 = vadd.f32 0.0, %v905
    %v907 = vpop.f32.mrf.mxu0
    %908 = vmatprep.mubr.f32.mxu0 0.0
    %909 = vmatmul.mubr.f32.gmra.mxu0 %v817
    %v910 = vpop.f32.mrf.mxu0
    %v911 = vadd.f32 0.0, %v910
    %v912 = vpop.f32.mrf.mxu0
    %913 = vmatprep.mubr.f32.mxu0 0.0
    %914 = vmatmul.mubr.f32.gmra.mxu0 %v818
    %v915 = vpop.f32.mrf.mxu0
    %v916 = vadd.f32 0.0, %v915
    %v917 = vpop.f32.mrf.mxu0
    %918 = vmatprep.mubr.f32.mxu0 0.0
    %919 = vmatmul.mubr.f32.gmra.mxu0 %v819
    %v920 = vpop.f32.mrf.mxu0
    %v921 = vadd.f32 0.0, %v920
    %v922 = vpop.f32.mrf.mxu0
    %923 = vmatprep.mubr.f32.mxu0 0.0
    %924 = vmatmul.mubr.f32.gmra.mxu0 %v820
    %v925 = vpop.f32.mrf.mxu0
    %v926 = vadd.f32 0.0, %v925
    %v927 = vpop.f32.mrf.mxu0
    %928 = vmatprep.mubr.f32.mxu0 0.0
    %929 = vmatmul.mubr.f32.gmra.mxu0 %v821
    %v930 = vpop.f32.mrf.mxu0
    %v931 = vadd.f32 0.0, %v930
    %v932 = vpop.f32.mrf.mxu0
    %933 = vmatprep.mubr.f32.mxu0 0.0
    %934 = vmatmul.mubr.f32.gmra.mxu0 %v822
    %v935 = vpop.f32.mrf.mxu0
    %v936 = vpop.f32.mrf.mxu0
    %937 = vdwg.mxu0
    %s938 = scalar_lea.vmem [#allocation8], 128
    %v939 = vld [vmem:[%s938] sm:$0xff]
    %v940 = vld [vmem:[%s938 + $0x8] sm:$0xff]
    %v941 = vld [vmem:[%s938 + $0x10] sm:$0xff]
    %v942 = vld [vmem:[%s938 + $0x18] sm:$0xff]
    %v943 = vld [vmem:[%s938 + $0x20] sm:$0xff]
    %v944 = vld [vmem:[%s938 + $0x28] sm:$0xff]
    %v945 = vld [vmem:[%s938 + $0x30] sm:$0xff]
    %v946 = vld [vmem:[%s938 + $0x38] sm:$0xff]
    %v947 = vld [vmem:[%s938 + $0x40] sm:$0xff]
    %v948 = vld [vmem:[%s938 + $0x48] sm:$0xff]
    %v949 = vld [vmem:[%s938 + $0x50] sm:$0xff]
    %v950 = vld [vmem:[%s938 + $0x58] sm:$0xff]
    %v951 = vld [vmem:[%s938 + $0x60] sm:$0xff]
    %v952 = vld [vmem:[%s938 + $0x68] sm:$0xff]
    %v953 = vld [vmem:[%s938 + $0x70] sm:$0xff]
    %v954 = vld [vmem:[%s938 + $0x78] sm:$0xff]
    %955 = vmatprep.subr.mxu0 0.0
    %956 = vmatpush1.msra.mxu0 %v954
    %957 = vmatprep.subr.mxu0 0.0
    %958 = vmatpush1.msra.mxu0 %v953
    %959 = vmatprep.subr.mxu0 0.0
    %960 = vmatpush1.msra.mxu0 %v952
    %961 = vmatprep.subr.mxu0 0.0
    %962 = vmatpush1.msra.mxu0 %v951
    %963 = vmatprep.subr.mxu0 0.0
    %964 = vmatpush1.msra.mxu0 %v950
    %965 = vmatprep.subr.mxu0 0.0
    %966 = vmatpush1.msra.mxu0 %v949
    %967 = vmatprep.subr.mxu0 0.0
    %968 = vmatpush1.msra.mxu0 %v948
    %969 = vmatprep.subr.mxu0 0.0
    %970 = vmatpush1.msra.mxu0 %v947
    %971 = vmatprep.subr.mxu0 0.0
    %972 = vmatpush1.msra.mxu0 %v946
    %973 = vmatprep.subr.mxu0 0.0
    %974 = vmatpush1.msra.mxu0 %v945
    %975 = vmatprep.subr.mxu0 0.0
    %976 = vmatpush1.msra.mxu0 %v944
    %977 = vmatprep.subr.mxu0 0.0
    %978 = vmatpush1.msra.mxu0 %v943
    %979 = vmatprep.subr.mxu0 0.0
    %980 = vmatpush1.msra.mxu0 %v942
    %981 = vmatprep.subr.mxu0 0.0
    %982 = vmatpush1.msra.mxu0 %v941
    %983 = vmatprep.subr.mxu0 0.0
    %984 = vmatpush1.msra.mxu0 %v940
    %985 = vmatprep.subr.mxu0 0.0
    %986 = vmatpush1.msra.mxu0 %v939
    %987 = vmatprep.subr.mxu0 0.0
    %988 = vmatpush2.msra.mxu0 0.0
    %989 = vmatprep.subr.mxu0 0.0
    %990 = vmatpush2.msra.mxu0 0.0
    %991 = vmatprep.subr.mxu0 0.0
    %992 = vmatpush2.msra.mxu0 0.0
    %993 = vmatprep.subr.mxu0 0.0
    %994 = vmatpush2.msra.mxu0 0.0
    %995 = vmatprep.subr.mxu0 0.0
    %996 = vmatpush2.msra.mxu0 0.0
    %997 = vmatprep.subr.mxu0 0.0
    %998 = vmatpush2.msra.mxu0 0.0
    %999 = vmatprep.subr.mxu0 0.0
    %1000 = vmatpush2.msra.mxu0 0.0
    %1001 = vmatprep.subr.mxu0 0.0
    %1002 = vmatpush2.msra.mxu0 0.0
    %1003 = vmatprep.subr.mxu0 0.0
    %1004 = vmatpush2.msra.mxu0 0.0
    %1005 = vmatprep.subr.mxu0 0.0
    %1006 = vmatpush2.msra.mxu0 0.0
    %1007 = vmatprep.subr.mxu0 0.0
    %1008 = vmatpush2.msra.mxu0 0.0
    %1009 = vmatprep.subr.mxu0 0.0
    %1010 = vmatpush2.msra.mxu0 0.0
    %1011 = vmatprep.subr.mxu0 0.0
    %1012 = vmatpush2.msra.mxu0 0.0
    %1013 = vmatprep.subr.mxu0 0.0
    %1014 = vmatpush2.msra.mxu0 0.0
    %1015 = vmatprep.subr.mxu0 0.0
    %1016 = vmatpush2.msra.mxu0 0.0
    %1017 = vmatprep.subr.mxu0 0.0
    %1018 = vmatpush2.msra.mxu0 0.0
    %1019 = vmatprep.mubr.f32.mxu0 0.0
    %1020 = vmatmul.mubr.f32.gmra.mxu0 %v816
    %v1021 = vpop.f32.mrf.mxu0
    %v1022 = vpop.f32.mrf.mxu0
    %1023 = vmatprep.mubr.f32.mxu0 0.0
    %1024 = vmatmul.mubr.f32.gmra.mxu0 %v817
    %v1025 = vpop.f32.mrf.mxu0
    %v1026 = vadd.f32 0.0, %v1025
    %v1027 = vpop.f32.mrf.mxu0
    %1028 = vmatprep.mubr.f32.mxu0 0.0
    %1029 = vmatmul.mubr.f32.gmra.mxu0 %v818
    %v1030 = vpop.f32.mrf.mxu0
    %v1031 = vadd.f32 0.0, %v1030
    %v1032 = vpop.f32.mrf.mxu0
    %1033 = vmatprep.mubr.f32.mxu0 0.0
    %1034 = vmatmul.mubr.f32.gmra.mxu0 %v819
    %v1035 = vpop.f32.mrf.mxu0
    %v1036 = vpop.f32.mrf.mxu0
    %1037 = vmatprep.mubr.f32.mxu0 0.0
    %1038 = vmatmul.mubr.f32.gmra.mxu0 %v820
    %v1039 = vpop.f32.mrf.mxu0
    %v1040 = vadd.f32 0.0, %v1039
    %v1041 = vpop.f32.mrf.mxu0
    %1042 = vmatprep.mubr.f32.mxu0 0.0
    %1043 = vmatmul.mubr.f32.gmra.mxu0 %v821
    %v1044 = vpop.f32.mrf.mxu0
    %v1045 = vadd.f32 0.0, %v1044
    %v1046 = vpop.f32.mrf.mxu0
    %1047 = vmatprep.mubr.f32.mxu0 0.0
    %1048 = vmatmul.mubr.f32.gmra.mxu0 %v822
    %v1049 = vpop.f32.mrf.mxu0
    %v1050 = vpop.f32.mrf.mxu0
    %1051 = vdwg.mxu0
    %s1052 = scalar_lea.vmem [#allocation8], 256
    %v1053 = vld [vmem:[%s1052] sm:$0xff]
    %v1054 = vld [vmem:[%s1052 + $0x8] sm:$0xff]
    %v1055 = vld [vmem:[%s1052 + $0x10] sm:$0xff]
    %v1056 = vld [vmem:[%s1052 + $0x18] sm:$0xff]
    %v1057 = vld [vmem:[%s1052 + $0x20] sm:$0xff]
    %v1058 = vld [vmem:[%s1052 + $0x28] sm:$0xff]
    %v1059 = vld [vmem:[%s1052 + $0x30] sm:$0xff]
    %v1060 = vld [vmem:[%s1052 + $0x38] sm:$0xff]
    %v1061 = vld [vmem:[%s1052 + $0x40] sm:$0xff]
    %v1062 = vld [vmem:[%s1052 + $0x48] sm:$0xff]
    %v1063 = vld [vmem:[%s1052 + $0x50] sm:$0xff]
    %v1064 = vld [vmem:[%s1052 + $0x58] sm:$0xff]
    %v1065 = vld [vmem:[%s1052 + $0x60] sm:$0xff]
    %v1066 = vld [vmem:[%s1052 + $0x68] sm:$0xff]
    %v1067 = vld [vmem:[%s1052 + $0x70] sm:$0xff]
    %v1068 = vld [vmem:[%s1052 + $0x78] sm:$0xff]
    %1069 = vmatprep.subr.mxu0 0.0
    %1070 = vmatpush1.msra.mxu0 %v1068
    %1071 = vmatprep.subr.mxu0 0.0
    %1072 = vmatpush1.msra.mxu0 %v1067
    %1073 = vmatprep.subr.mxu0 0.0
    %1074 = vmatpush1.msra.mxu0 %v1066
    %1075 = vmatprep.subr.mxu0 0.0
    %1076 = vmatpush1.msra.mxu0 %v1065
    %1077 = vmatprep.subr.mxu0 0.0
    %1078 = vmatpush1.msra.mxu0 %v1064
    %1079 = vmatprep.subr.mxu0 0.0
    %1080 = vmatpush1.msra.mxu0 %v1063
    %1081 = vmatprep.subr.mxu0 0.0
    %1082 = vmatpush1.msra.mxu0 %v1062
    %1083 = vmatprep.subr.mxu0 0.0
    %1084 = vmatpush1.msra.mxu0 %v1061
    %1085 = vmatprep.subr.mxu0 0.0
    %1086 = vmatpush1.msra.mxu0 %v1060
    %1087 = vmatprep.subr.mxu0 0.0
    %1088 = vmatpush1.msra.mxu0 %v1059
    %1089 = vmatprep.subr.mxu0 0.0
    %1090 = vmatpush1.msra.mxu0 %v1058
    %1091 = vmatprep.subr.mxu0 0.0
    %1092 = vmatpush1.msra.mxu0 %v1057
    %1093 = vmatprep.subr.mxu0 0.0
    %1094 = vmatpush1.msra.mxu0 %v1056
    %1095 = vmatprep.subr.mxu0 0.0
    %1096 = vmatpush1.msra.mxu0 %v1055
    %1097 = vmatprep.subr.mxu0 0.0
    %1098 = vmatpush1.msra.mxu0 %v1054
    %1099 = vmatprep.subr.mxu0 0.0
    %1100 = vmatpush1.msra.mxu0 %v1053
    %1101 = vmatprep.subr.mxu0 0.0
    %1102 = vmatpush2.msra.mxu0 0.0
    %1103 = vmatprep.subr.mxu0 0.0
    %1104 = vmatpush2.msra.mxu0 0.0
    %1105 = vmatprep.subr.mxu0 0.0
    %1106 = vmatpush2.msra.mxu0 0.0
    %1107 = vmatprep.subr.mxu0 0.0
    %1108 = vmatpush2.msra.mxu0 0.0
    %1109 = vmatprep.subr.mxu0 0.0
    %1110 = vmatpush2.msra.mxu0 0.0
    %1111 = vmatprep.subr.mxu0 0.0
    %1112 = vmatpush2.msra.mxu0 0.0
    %1113 = vmatprep.subr.mxu0 0.0
    %1114 = vmatpush2.msra.mxu0 0.0
    %1115 = vmatprep.subr.mxu0 0.0
    %1116 = vmatpush2.msra.mxu0 0.0
    %1117 = vmatprep.subr.mxu0 0.0
    %1118 = vmatpush2.msra.mxu0 0.0
    %1119 = vmatprep.subr.mxu0 0.0
    %1120 = vmatpush2.msra.mxu0 0.0
    %1121 = vmatprep.subr.mxu0 0.0
    %1122 = vmatpush2.msra.mxu0 0.0
    %1123 = vmatprep.subr.mxu0 0.0
    %1124 = vmatpush2.msra.mxu0 0.0
    %1125 = vmatprep.subr.mxu0 0.0
    %1126 = vmatpush2.msra.mxu0 0.0
    %1127 = vmatprep.subr.mxu0 0.0
    %1128 = vmatpush2.msra.mxu0 0.0
    %1129 = vmatprep.subr.mxu0 0.0
    %1130 = vmatpush2.msra.mxu0 0.0
    %1131 = vmatprep.subr.mxu0 0.0
    %1132 = vmatpush2.msra.mxu0 0.0
    %1133 = vmatprep.mubr.f32.mxu0 0.0
    %1134 = vmatmul.mubr.f32.gmra.mxu0 %v816
    %v1135 = vpop.f32.mrf.mxu0
    %v1136 = vpop.f32.mrf.mxu0
    %1137 = vmatprep.mubr.f32.mxu0 0.0
    %1138 = vmatmul.mubr.f32.gmra.mxu0 %v817
    %v1139 = vpop.f32.mrf.mxu0
    %v1140 = vadd.f32 0.0, %v1139
    %v1141 = vpop.f32.mrf.mxu0
    %1142 = vmatprep.mubr.f32.mxu0 0.0
    %1143 = vmatmul.mubr.f32.gmra.mxu0 %v818
    %v1144 = vpop.f32.mrf.mxu0
    %v1145 = vadd.f32 0.0, %v1144
    %v1146 = vpop.f32.mrf.mxu0
    %1147 = vmatprep.mubr.f32.mxu0 0.0
    %1148 = vmatmul.mubr.f32.gmra.mxu0 %v819
    %v1149 = vpop.f32.mrf.mxu0
    %v1150 = vadd.f32 0.0, %v1149
    %v1151 = vpop.f32.mrf.mxu0
    %1152 = vmatprep.mubr.f32.mxu0 0.0
    %1153 = vmatmul.mubr.f32.gmra.mxu0 %v820
    %v1154 = vpop.f32.mrf.mxu0
    %v1155 = vadd.f32 0.0, %v1154
    %v1156 = vpop.f32.mrf.mxu0
    %1157 = vmatprep.mubr.f32.mxu0 0.0
    %1158 = vmatmul.mubr.f32.gmra.mxu0 %v821
    %v1159 = vpop.f32.mrf.mxu0
    %v1160 = vadd.f32 0.0, %v1159
    %v1161 = vpop.f32.mrf.mxu0
    %1162 = vmatprep.mubr.f32.mxu0 0.0
    %1163 = vmatmul.mubr.f32.gmra.mxu0 %v822
    %v1164 = vpop.f32.mrf.mxu0
    %v1165 = vadd.f32 0.0, %v1164
    %v1166 = vpop.f32.mrf.mxu0
    %1167 = vdwg.mxu0
    %v1170 = vrot.slane %v1026, 1
    %v1171 = vrot.slane %v1031, 1
    %v1172 = vsel %vm510, %v1170, %v1171
    %v1176 = vadd.f32 %v906, %v1170
    %v1177 = vadd.f32 %v911, %v1172
    %v1178 = vadd.f32 %v916, %v1171
    %v1182 = vrot.slane %v1140, 2
    %v1183 = vrot.slane %v1145, 2
    %v1184 = vsel %vm523, %v1182, %v1183
    %v1185 = vrot.slane %v1150, 2
    %v1186 = vsel %vm523, %v1183, %v1185
    %v1190 = vadd.f32 %v1176, %v1182
    %v1191 = vadd.f32 %v1177, %v1184
    %v1192 = vadd.f32 %v1178, %v1186
    %v1196 = vrot.slane %v1190, 7
    %v1197 = vrot.slane %v1191, 7
    %v1198 = vsel %vm538, %v1196, %v1197
    %v1199 = vrot.slane %v1192, 7
    %v1200 = vsel %vm538, %v1197, %v1199
    %v1203 = vadd.f32 %v1198, %v1200
    %v1204 = vrot.slane %v1203, 4
    %v1205 = vadd.f32 %v1203, %v1204
    %v1206 = vrot.slane %v1205, 2
    %v1207 = vadd.f32 %v1205, %v1206
    %v1208 = vrot.slane %v1207, 1
    %v1209 = vadd.f32 %v1207, %v1208
    %v1210 = vadd.f32 %v1209, 0.0
    %v1211 = vmul.f32 %v1190, %v1190
    %v1212 = vmul.f32 %v1191, %v1191
    %v1213 = vmul.f32 %v1192, %v1192
    %v1217 = vrot.slane %v1211, 7
    %v1218 = vrot.slane %v1212, 7
    %v1219 = vsel %vm538, %v1217, %v1218
    %v1220 = vrot.slane %v1213, 7
    %v1221 = vsel %vm538, %v1218, %v1220
    %v1224 = vadd.f32 %v1219, %v1221
    %v1225 = vrot.slane %v1224, 4
    %v1226 = vadd.f32 %v1224, %v1225
    %v1227 = vrot.slane %v1226, 2
    %v1228 = vadd.f32 %v1226, %v1227
    %v1229 = vrot.slane %v1228, 1
    %v1230 = vadd.f32 %v1228, %v1229
    %v1231 = vadd.f32 %v1230, 0.0
    %1232 = vst [vmem:[#allocation2 + $0x1] sm:$0x80] %v1190
    %1233 = vst [vmem:[#allocation2 + $0x9] sm:$0xff] %v1191
    %1234 = vst [vmem:[#allocation2 + $0x11] sm:$0x7f] %v1192
    %v1237 = vrot.slane %v1040, 1
    %v1238 = vrot.slane %v1045, 1
    %v1239 = vsel %vm510, %v1237, %v1238
    %v1243 = vadd.f32 %v921, %v1237
    %v1244 = vadd.f32 %v926, %v1239
    %v1245 = vadd.f32 %v931, %v1238
    %v1249 = vrot.slane %v1155, 2
    %v1250 = vrot.slane %v1160, 2
    %v1251 = vsel %vm523, %v1249, %v1250
    %v1252 = vrot.slane %v1165, 2
    %v1253 = vsel %vm523, %v1250, %v1252
    %v1257 = vadd.f32 %v1243, %v1249
    %v1258 = vadd.f32 %v1244, %v1251
    %v1259 = vadd.f32 %v1245, %v1253
    %v1263 = vrot.slane %v1257, 7
    %v1264 = vrot.slane %v1258, 7
    %v1265 = vsel %vm538, %v1263, %v1264
    %v1266 = vrot.slane %v1259, 7
    %v1267 = vsel %vm538, %v1264, %v1266
    %v1270 = vadd.f32 %v1265, %v1267
    %v1271 = vrot.slane %v1270, 4
    %v1272 = vadd.f32 %v1270, %v1271
    %v1273 = vrot.slane %v1272, 2
    %v1274 = vadd.f32 %v1272, %v1273
    %v1275 = vrot.slane %v1274, 1
    %v1276 = vadd.f32 %v1274, %v1275
    %v1277 = vadd.f32 %v1210, %v1276
    %v1278 = vmul.f32 %v1257, %v1257
    %v1279 = vmul.f32 %v1258, %v1258
    %v1280 = vmul.f32 %v1259, %v1259
    %v1284 = vrot.slane %v1278, 7
    %v1285 = vrot.slane %v1279, 7
    %v1286 = vsel %vm538, %v1284, %v1285
    %v1287 = vrot.slane %v1280, 7
    %v1288 = vsel %vm538, %v1285, %v1287
    %v1291 = vadd.f32 %v1286, %v1288
    %v1292 = vrot.slane %v1291, 4
    %v1293 = vadd.f32 %v1291, %v1292
    %v1294 = vrot.slane %v1293, 2
    %v1295 = vadd.f32 %v1293, %v1294
    %v1296 = vrot.slane %v1295, 1
    %v1297 = vadd.f32 %v1295, %v1296
    %v1298 = vadd.f32 %v1231, %v1297
    %1299 = vst [vmem:[#allocation2 + $0x19] sm:$0x80] %v1257
    %1300 = vst [vmem:[#allocation2 + $0x21] sm:$0xff] %v1258
    %1301 = vst [vmem:[#allocation2 + $0x29] sm:$0x7f] %v1259
    %v1302 = vsel %vm538, %v1277, %v1298
    %v1303 = vld [vmem:[%s11] sm:$0xff]
    %v1304 = vld [vmem:[%s11 + $0x8] sm:$0xff]
    %v1305 = vld [vmem:[%s11 + $0x10] sm:$0xff]
    %v1306 = vld [vmem:[%s11 + $0x18] sm:$0xff]
    %v1307 = vld [vmem:[%s11 + $0x20] sm:$0xff]
    %v1308 = vld [vmem:[%s11 + $0x28] sm:$0xff]
    %v1309 = vld [vmem:[%s11 + $0x30] sm:$0xff]
    %v1310 = vld [vmem:[%s11 + $0x38] sm:$0xff]
    %v1311 = vld [vmem:[%s11 + $0x40] sm:$0xff]
    %v1312 = vld [vmem:[%s11 + $0x48] sm:$0xff]
    %v1313 = vld [vmem:[%s11 + $0x50] sm:$0xff]
    %v1314 = vld [vmem:[%s11 + $0x58] sm:$0xff]
    %v1315 = vld [vmem:[%s11 + $0x60] sm:$0xff]
    %v1316 = vld [vmem:[%s11 + $0x68] sm:$0xff]
    %v1317 = vld [vmem:[%s11 + $0x70] sm:$0xff]
    %v1318 = vld [vmem:[%s11 + $0x78] sm:$0xff]
    %1319 = vmatprep.subr.mxu0 0.0
    %1320 = vmatpush1.msra.mxu0 %v1318
    %1321 = vmatprep.subr.mxu0 0.0
    %1322 = vmatpush1.msra.mxu0 %v1317
    %1323 = vmatprep.subr.mxu0 0.0
    %1324 = vmatpush1.msra.mxu0 %v1316
    %1325 = vmatprep.subr.mxu0 0.0
    %1326 = vmatpush1.msra.mxu0 %v1315
    %1327 = vmatprep.subr.mxu0 0.0
    %1328 = vmatpush1.msra.mxu0 %v1314
    %1329 = vmatprep.subr.mxu0 0.0
    %1330 = vmatpush1.msra.mxu0 %v1313
    %1331 = vmatprep.subr.mxu0 0.0
    %1332 = vmatpush1.msra.mxu0 %v1312
    %1333 = vmatprep.subr.mxu0 0.0
    %1334 = vmatpush1.msra.mxu0 %v1311
    %1335 = vmatprep.subr.mxu0 0.0
    %1336 = vmatpush1.msra.mxu0 %v1310
    %1337 = vmatprep.subr.mxu0 0.0
    %1338 = vmatpush1.msra.mxu0 %v1309
    %1339 = vmatprep.subr.mxu0 0.0
    %1340 = vmatpush1.msra.mxu0 %v1308
    %1341 = vmatprep.subr.mxu0 0.0
    %1342 = vmatpush1.msra.mxu0 %v1307
    %1343 = vmatprep.subr.mxu0 0.0
    %1344 = vmatpush1.msra.mxu0 %v1306
    %1345 = vmatprep.subr.mxu0 0.0
    %1346 = vmatpush1.msra.mxu0 %v1305
    %1347 = vmatprep.subr.mxu0 0.0
    %1348 = vmatpush1.msra.mxu0 %v1304
    %1349 = vmatprep.subr.mxu0 0.0
    %1350 = vmatpush1.msra.mxu0 %v1303
    %1351 = vmatprep.subr.mxu0 0.0
    %1352 = vmatpush2.msra.mxu0 0.0
    %1353 = vmatprep.subr.mxu0 0.0
    %1354 = vmatpush2.msra.mxu0 0.0
    %1355 = vmatprep.subr.mxu0 0.0
    %1356 = vmatpush2.msra.mxu0 0.0
    %1357 = vmatprep.subr.mxu0 0.0
    %1358 = vmatpush2.msra.mxu0 0.0
    %1359 = vmatprep.subr.mxu0 0.0
    %1360 = vmatpush2.msra.mxu0 0.0
    %1361 = vmatprep.subr.mxu0 0.0
    %1362 = vmatpush2.msra.mxu0 0.0
    %1363 = vmatprep.subr.mxu0 0.0
    %1364 = vmatpush2.msra.mxu0 0.0
    %1365 = vmatprep.subr.mxu0 0.0
    %1366 = vmatpush2.msra.mxu0 0.0
    %1367 = vmatprep.subr.mxu0 0.0
    %1368 = vmatpush2.msra.mxu0 0.0
    %1369 = vmatprep.subr.mxu0 0.0
    %1370 = vmatpush2.msra.mxu0 0.0
    %1371 = vmatprep.subr.mxu0 0.0
    %1372 = vmatpush2.msra.mxu0 0.0
    %1373 = vmatprep.subr.mxu0 0.0
    %1374 = vmatpush2.msra.mxu0 0.0
    %1375 = vmatprep.subr.mxu0 0.0
    %1376 = vmatpush2.msra.mxu0 0.0
    %1377 = vmatprep.subr.mxu0 0.0
    %1378 = vmatpush2.msra.mxu0 0.0
    %1379 = vmatprep.subr.mxu0 0.0
    %1380 = vmatpush2.msra.mxu0 0.0
    %1381 = vmatprep.subr.mxu0 0.0
    %1382 = vmatpush2.msra.mxu0 0.0
    %1383 = vmatprep.mubr.f32.mxu0 0.0
    %1384 = vmatmul.mubr.f32.gmra.mxu0 %v1302
    %v1385 = vpop.f32.mrf.mxu0
    %v1386 = vadd.f32 0.0, %v1385
    %v1387 = vpop.f32.mrf.mxu0
    %1388 = vdwg.mxu0
    %v1389 = vmul.f32 %v1386, 0.001953125
    %v1390 = vmul.f32 %v1389, %v1389
    %v1392 = vrot.slane %v1390, 7
    %v1394 = vsub.f32 %v1389, %v1392
    %v1395 = vadd.f32 %v1394, 1e-05
    %v1396 = vrsqrt.pop %v1395
    %v1397 = vld [vmem:[#allocation9] sm:$0x1]
    %v1399 = vlaneseq
    %v1400 = vshrl.u32 %v1399, 7
    %v1401 = vsub.s32 0, %v1400
    %v1402 = vrot.slane %v1397, %v1401
    %v1404 = vmul.f32 %v1396, %v1402
    %v1405 = vld [vmem:[#allocation11] sm:$0x1]
    %v1407 = vrot.slane %v1404, 1
    %v1409 = vmul.f32 %v1389, %v1407
    %v1410 = vsub.f32 %v1405, %v1409
    %v1411 = vmul.f32 %v1209, 0.0625
    %v1412 = vmul.f32 %v1411, %v1404
    %v1414 = vlaneseq
    %v1415 = vshrl.u32 %v1414, 7
    %v1416 = vsub.s32 0, %v1415
    %v1417 = vrot.slane %v1410, %v1416
    %v1419 = vadd.f32 %v1412, %v1417
    %v1420 = vld [vmem:[%s12] sm:$0xff]
    %v1421 = vld [vmem:[%s12 + $0x8] sm:$0xff]
    %v1422 = vld [vmem:[%s12 + $0x10] sm:$0xff]
    %v1423 = vld [vmem:[%s12 + $0x18] sm:$0xff]
    %v1424 = vld [vmem:[%s12 + $0x20] sm:$0xff]
    %v1425 = vld [vmem:[%s12 + $0x28] sm:$0xff]
    %v1426 = vld [vmem:[%s12 + $0x30] sm:$0xff]
    %v1427 = vld [vmem:[%s12 + $0x38] sm:$0xff]
    %v1428 = vld [vmem:[%s12 + $0x40] sm:$0xff]
    %v1429 = vld [vmem:[%s12 + $0x48] sm:$0xff]
    %v1430 = vld [vmem:[%s12 + $0x50] sm:$0xff]
    %v1431 = vld [vmem:[%s12 + $0x58] sm:$0xff]
    %v1432 = vld [vmem:[%s12 + $0x60] sm:$0xff]
    %v1433 = vld [vmem:[%s12 + $0x68] sm:$0xff]
    %v1434 = vld [vmem:[%s12 + $0x70] sm:$0xff]
    %v1435 = vld [vmem:[%s12 + $0x78] sm:$0xff]
    %v1437 = vrot.slane %v1419, 1
    %1439 = vmatprep.subr.mxu0 0.0
    %1440 = vmatpush1.msra.mxu0 %v1435
    %1441 = vmatprep.subr.mxu0 0.0
    %1442 = vmatpush1.msra.mxu0 %v1434
    %1443 = vmatprep.subr.mxu0 0.0
    %1444 = vmatpush1.msra.mxu0 %v1433
    %1445 = vmatprep.subr.mxu0 0.0
    %1446 = vmatpush1.msra.mxu0 %v1432
    %1447 = vmatprep.subr.mxu0 0.0
    %1448 = vmatpush1.msra.mxu0 %v1431
    %1449 = vmatprep.subr.mxu0 0.0
    %1450 = vmatpush1.msra.mxu0 %v1430
    %1451 = vmatprep.subr.mxu0 0.0
    %1452 = vmatpush1.msra.mxu0 %v1429
    %1453 = vmatprep.subr.mxu0 0.0
    %1454 = vmatpush1.msra.mxu0 %v1428
    %1455 = vmatprep.subr.mxu0 0.0
    %1456 = vmatpush1.msra.mxu0 %v1427
    %1457 = vmatprep.subr.mxu0 0.0
    %1458 = vmatpush1.msra.mxu0 %v1426
    %1459 = vmatprep.subr.mxu0 0.0
    %1460 = vmatpush1.msra.mxu0 %v1425
    %1461 = vmatprep.subr.mxu0 0.0
    %1462 = vmatpush1.msra.mxu0 %v1424
    %1463 = vmatprep.subr.mxu0 0.0
    %1464 = vmatpush1.msra.mxu0 %v1423
    %1465 = vmatprep.subr.mxu0 0.0
    %1466 = vmatpush1.msra.mxu0 %v1422
    %1467 = vmatprep.subr.mxu0 0.0
    %1468 = vmatpush1.msra.mxu0 %v1421
    %1469 = vmatprep.subr.mxu0 0.0
    %1470 = vmatpush1.msra.mxu0 %v1420
    %1471 = vmatprep.subr.mxu0 0.0
    %1472 = vmatpush2.msra.mxu0 0.0
    %1473 = vmatprep.subr.mxu0 0.0
    %1474 = vmatpush2.msra.mxu0 0.0
    %1475 = vmatprep.subr.mxu0 0.0
    %1476 = vmatpush2.msra.mxu0 0.0
    %1477 = vmatprep.subr.mxu0 0.0
    %1478 = vmatpush2.msra.mxu0 0.0
    %1479 = vmatprep.subr.mxu0 0.0
    %1480 = vmatpush2.msra.mxu0 0.0
    %1481 = vmatprep.subr.mxu0 0.0
    %1482 = vmatpush2.msra.mxu0 0.0
    %1483 = vmatprep.subr.mxu0 0.0
    %1484 = vmatpush2.msra.mxu0 0.0
    %1485 = vmatprep.subr.mxu0 0.0
    %1486 = vmatpush2.msra.mxu0 0.0
    %1487 = vmatprep.subr.mxu0 0.0
    %1488 = vmatpush2.msra.mxu0 0.0
    %1489 = vmatprep.subr.mxu0 0.0
    %1490 = vmatpush2.msra.mxu0 0.0
    %1491 = vmatprep.subr.mxu0 0.0
    %1492 = vmatpush2.msra.mxu0 0.0
    %1493 = vmatprep.subr.mxu0 0.0
    %1494 = vmatpush2.msra.mxu0 0.0
    %1495 = vmatprep.subr.mxu0 0.0
    %1496 = vmatpush2.msra.mxu0 0.0
    %1497 = vmatprep.subr.mxu0 0.0
    %1498 = vmatpush2.msra.mxu0 0.0
    %1499 = vmatprep.subr.mxu0 0.0
    %1500 = vmatpush2.msra.mxu0 0.0
    %1501 = vmatprep.subr.mxu0 0.0
    %1502 = vmatpush2.msra.mxu0 0.0
    %1503 = vmatprep.mubr.f32.mxu0 0.0
    %1504 = vmatmul.mubr.f32.gmra.mxu0 %v1437
    %v1505 = vpop.f32.mrf.mxu0
    %v1506 = vadd.f32 0.0, %v1505
    %v1507 = vpop.f32.mrf.mxu0
    %1508 = vdwg.mxu0
    %v1509 = vmul.f32 %v1506, 0.0625
    %v1510 = vld [vmem:[%s7] sm:$0xff]
    %v1511 = vld [vmem:[#allocation12] sm:$0x1]
    %vm1512 = vcmask 64512
    %v1514 = vsel %vm1512, %v1509, 0
    %1516 = vmatprep.subr.mxu0 0.0
    %1517 = vmatpush1.msra.mxu0 0.0
    %1518 = vmatprep.subr.mxu0 0.0
    %1519 = vmatpush1.msra.mxu0 0.0
    %1520 = vmatprep.subr.mxu0 0.0
    %1521 = vmatpush1.msra.mxu0 0.0
    %1522 = vmatprep.subr.mxu0 0.0
    %1523 = vmatpush1.msra.mxu0 0.0
    %1524 = vmatprep.subr.mxu0 0.0
    %1525 = vmatpush1.msra.mxu0 0.0
    %1526 = vmatprep.subr.mxu0 0.0
    %1527 = vmatpush1.msra.mxu0 0.0
    %1528 = vmatprep.subr.mxu0 0.0
    %1529 = vmatpush1.msra.mxu0 0.0
    %1530 = vmatprep.subr.mxu0 0.0
    %1531 = vmatpush1.msra.mxu0 0.0
    %1532 = vmatprep.subr.mxu0 0.0
    %1533 = vmatpush1.msra.mxu0 0.0
    %1534 = vmatprep.subr.mxu0 0.0
    %1535 = vmatpush1.msra.mxu0 0.0
    %1536 = vmatprep.subr.mxu0 0.0
    %1537 = vmatpush1.msra.mxu0 0.0
    %1538 = vmatprep.subr.mxu0 0.0
    %1539 = vmatpush1.msra.mxu0 0.0
    %1540 = vmatprep.subr.mxu0 0.0
    %1541 = vmatpush1.msra.mxu0 0.0
    %1542 = vmatprep.subr.mxu0 0.0
    %1543 = vmatpush1.msra.mxu0 0.0
    %1544 = vmatprep.subr.mxu0 0.0
    %1545 = vmatpush1.msra.mxu0 0.0
    %1546 = vmatprep.subr.mxu0 0.0
    %1547 = vmatpush1.msra.mxu0 %v1510
    %1548 = vmatprep.subr.mxu0 0.0
    %1549 = vmatpush2.msra.mxu0 0.0
    %1550 = vmatprep.subr.mxu0 0.0
    %1551 = vmatpush2.msra.mxu0 0.0
    %1552 = vmatprep.subr.mxu0 0.0
    %1553 = vmatpush2.msra.mxu0 0.0
    %1554 = vmatprep.subr.mxu0 0.0
    %1555 = vmatpush2.msra.mxu0 0.0
    %1556 = vmatprep.subr.mxu0 0.0
    %1557 = vmatpush2.msra.mxu0 0.0
    %1558 = vmatprep.subr.mxu0 0.0
    %1559 = vmatpush2.msra.mxu0 0.0
    %1560 = vmatprep.subr.mxu0 0.0
    %1561 = vmatpush2.msra.mxu0 0.0
    %1562 = vmatprep.subr.mxu0 0.0
    %1563 = vmatpush2.msra.mxu0 0.0
    %1564 = vmatprep.subr.mxu0 0.0
    %1565 = vmatpush2.msra.mxu0 0.0
    %1566 = vmatprep.subr.mxu0 0.0
    %1567 = vmatpush2.msra.mxu0 0.0
    %1568 = vmatprep.subr.mxu0 0.0
    %1569 = vmatpush2.msra.mxu0 0.0
    %1570 = vmatprep.subr.mxu0 0.0
    %1571 = vmatpush2.msra.mxu0 0.0
    %1572 = vmatprep.subr.mxu0 0.0
    %1573 = vmatpush2.msra.mxu0 0.0
    %1574 = vmatprep.subr.mxu0 0.0
    %1575 = vmatpush2.msra.mxu0 0.0
    %1576 = vmatprep.subr.mxu0 0.0
    %1577 = vmatpush2.msra.mxu0 0.0
    %1578 = vmatprep.subr.mxu0 0.0
    %1579 = vmatpush2.msra.mxu0 0.0
    %1580 = vmatprep.mubr.f32.mxu0 0.0
    %1581 = vmatmul.mubr.f32.gmra.mxu0 %v1514
    %v1582 = vpop.f32.mrf.mxu0
    %v1583 = vadd.f32 %v1511, %v1582
    %v1584 = vpop.f32.mrf.mxu0
    %1585 = vdwg.mxu0
    %v1586 = vmax.f32 %v1583, 0.0
    %v1587 = vld [vmem:[#allocation14] sm:$0x3]
    %v1588 = vld [vmem:[#allocation15] sm:$0x1]
    %vm1589 = vcmask 15360
    %v1591 = vsel %vm1589, %v1586, 0
    %vm1593 = vcmask 1041408
    %v1595 = vsel %vm1593, %v1587, 0
    %1597 = vmatprep.subr.mxu0 0.0
    %1598 = vmatpush1.msra.mxu0 0.0
    %1599 = vmatprep.subr.mxu0 0.0
    %1600 = vmatpush1.msra.mxu0 0.0
    %1601 = vmatprep.subr.mxu0 0.0
    %1602 = vmatpush1.msra.mxu0 0.0
    %1603 = vmatprep.subr.mxu0 0.0
    %1604 = vmatpush1.msra.mxu0 0.0
    %1605 = vmatprep.subr.mxu0 0.0
    %1606 = vmatpush1.msra.mxu0 0.0
    %1607 = vmatprep.subr.mxu0 0.0
    %1608 = vmatpush1.msra.mxu0 0.0
    %1609 = vmatprep.subr.mxu0 0.0
    %1610 = vmatpush1.msra.mxu0 0.0
    %1611 = vmatprep.subr.mxu0 0.0
    %1612 = vmatpush1.msra.mxu0 0.0
    %1613 = vmatprep.subr.mxu0 0.0
    %1614 = vmatpush1.msra.mxu0 0.0
    %1615 = vmatprep.subr.mxu0 0.0
    %1616 = vmatpush1.msra.mxu0 0.0
    %1617 = vmatprep.subr.mxu0 0.0
    %1618 = vmatpush1.msra.mxu0 0.0
    %1619 = vmatprep.subr.mxu0 0.0
    %1620 = vmatpush1.msra.mxu0 0.0
    %1621 = vmatprep.subr.mxu0 0.0
    %1622 = vmatpush1.msra.mxu0 0.0
    %1623 = vmatprep.subr.mxu0 0.0
    %1624 = vmatpush1.msra.mxu0 0.0
    %1625 = vmatprep.subr.mxu0 0.0
    %1626 = vmatpush1.msra.mxu0 0.0
    %1627 = vmatprep.subr.mxu0 0.0
    %1628 = vmatpush1.msra.mxu0 %v1595
    %1629 = vmatprep.subr.mxu0 0.0
    %1630 = vmatpush2.msra.mxu0 0.0
    %1631 = vmatprep.subr.mxu0 0.0
    %1632 = vmatpush2.msra.mxu0 0.0
    %1633 = vmatprep.subr.mxu0 0.0
    %1634 = vmatpush2.msra.mxu0 0.0
    %1635 = vmatprep.subr.mxu0 0.0
    %1636 = vmatpush2.msra.mxu0 0.0
    %1637 = vmatprep.subr.mxu0 0.0
    %1638 = vmatpush2.msra.mxu0 0.0
    %1639 = vmatprep.subr.mxu0 0.0
    %1640 = vmatpush2.msra.mxu0 0.0
    %1641 = vmatprep.subr.mxu0 0.0
    %1642 = vmatpush2.msra.mxu0 0.0
    %1643 = vmatprep.subr.mxu0 0.0
    %1644 = vmatpush2.msra.mxu0 0.0
    %1645 = vmatprep.subr.mxu0 0.0
    %1646 = vmatpush2.msra.mxu0 0.0
    %1647 = vmatprep.subr.mxu0 0.0
    %1648 = vmatpush2.msra.mxu0 0.0
    %1649 = vmatprep.subr.mxu0 0.0
    %1650 = vmatpush2.msra.mxu0 0.0
    %1651 = vmatprep.subr.mxu0 0.0
    %1652 = vmatpush2.msra.mxu0 0.0
    %1653 = vmatprep.subr.mxu0 0.0
    %1654 = vmatpush2.msra.mxu0 0.0
    %1655 = vmatprep.subr.mxu0 0.0
    %1656 = vmatpush2.msra.mxu0 0.0
    %1657 = vmatprep.subr.mxu0 0.0
    %1658 = vmatpush2.msra.mxu0 0.0
    %1659 = vmatprep.subr.mxu0 0.0
    %1660 = vmatpush2.msra.mxu0 0.0
    %1661 = vmatprep.mubr.f32.mxu0 0.0
    %1662 = vmatmul.mubr.f32.gmra.mxu0 %v1591
    %v1663 = vpop.f32.mrf.mxu0
    %v1664 = vadd.f32 %v1588, %v1663
    %v1665 = vpop.f32.mrf.mxu0
    %1666 = vdwg.mxu0
    %v1667 = vsub.f32 0.0, %v1664
    %v1668 = vmul.f32 %v1667, 1.442695
    %v1669 = vpow.pop %v1668
    %v1670 = vadd.f32 %v1669, 1.0
    %v1671 = vrcp.pop %v1670
    %v1672 = vld [vmem:[%s13] sm:$0xff]
    %v1674 = vsel %vm1512, %v1671, 0
    %1676 = vmatprep.subr.mxu0 0.0
    %1677 = vmatpush1.msra.mxu0 0.0
    %1678 = vmatprep.subr.mxu0 0.0
    %1679 = vmatpush1.msra.mxu0 0.0
    %1680 = vmatprep.subr.mxu0 0.0
    %1681 = vmatpush1.msra.mxu0 0.0
    %1682 = vmatprep.subr.mxu0 0.0
    %1683 = vmatpush1.msra.mxu0 0.0
    %1684 = vmatprep.subr.mxu0 0.0
    %1685 = vmatpush1.msra.mxu0 0.0
    %1686 = vmatprep.subr.mxu0 0.0
    %1687 = vmatpush1.msra.mxu0 0.0
    %1688 = vmatprep.subr.mxu0 0.0
    %1689 = vmatpush1.msra.mxu0 0.0
    %1690 = vmatprep.subr.mxu0 0.0
    %1691 = vmatpush1.msra.mxu0 0.0
    %1692 = vmatprep.subr.mxu0 0.0
    %1693 = vmatpush1.msra.mxu0 0.0
    %1694 = vmatprep.subr.mxu0 0.0
    %1695 = vmatpush1.msra.mxu0 0.0
    %1696 = vmatprep.subr.mxu0 0.0
    %1697 = vmatpush1.msra.mxu0 0.0
    %1698 = vmatprep.subr.mxu0 0.0
    %1699 = vmatpush1.msra.mxu0 0.0
    %1700 = vmatprep.subr.mxu0 0.0
    %1701 = vmatpush1.msra.mxu0 0.0
    %1702 = vmatprep.subr.mxu0 0.0
    %1703 = vmatpush1.msra.mxu0 0.0
    %1704 = vmatprep.subr.mxu0 0.0
    %1705 = vmatpush1.msra.mxu0 0.0
    %1706 = vmatprep.subr.mxu0 0.0
    %1707 = vmatpush1.msra.mxu0 %v1672
    %1708 = vmatprep.subr.mxu0 0.0
    %1709 = vmatpush2.msra.mxu0 0.0
    %1710 = vmatprep.subr.mxu0 0.0
    %1711 = vmatpush2.msra.mxu0 0.0
    %1712 = vmatprep.subr.mxu0 0.0
    %1713 = vmatpush2.msra.mxu0 0.0
    %1714 = vmatprep.subr.mxu0 0.0
    %1715 = vmatpush2.msra.mxu0 0.0
    %1716 = vmatprep.subr.mxu0 0.0
    %1717 = vmatpush2.msra.mxu0 0.0
    %1718 = vmatprep.subr.mxu0 0.0
    %1719 = vmatpush2.msra.mxu0 0.0
    %1720 = vmatprep.subr.mxu0 0.0
    %1721 = vmatpush2.msra.mxu0 0.0
    %1722 = vmatprep.subr.mxu0 0.0
    %1723 = vmatpush2.msra.mxu0 0.0
    %1724 = vmatprep.subr.mxu0 0.0
    %1725 = vmatpush2.msra.mxu0 0.0
    %1726 = vmatprep.subr.mxu0 0.0
    %1727 = vmatpush2.msra.mxu0 0.0
    %1728 = vmatprep.subr.mxu0 0.0
    %1729 = vmatpush2.msra.mxu0 0.0
    %1730 = vmatprep.subr.mxu0 0.0
    %1731 = vmatpush2.msra.mxu0 0.0
    %1732 = vmatprep.subr.mxu0 0.0
    %1733 = vmatpush2.msra.mxu0 0.0
    %1734 = vmatprep.subr.mxu0 0.0
    %1735 = vmatpush2.msra.mxu0 0.0
    %1736 = vmatprep.subr.mxu0 0.0
    %1737 = vmatpush2.msra.mxu0 0.0
    %1738 = vmatprep.subr.mxu0 0.0
    %1739 = vmatpush2.msra.mxu0 0.0
    %1740 = vmatprep.mubr.f32.mxu0 0.0
    %1741 = vmatmul.mubr.f32.gmra.mxu0 %v1674
    %v1742 = vpop.f32.mrf.mxu0
    %v1743 = vadd.f32 0.0, %v1742
    %v1744 = vpop.f32.mrf.mxu0
    %1745 = vdwg.mxu0
    %v1746 = vld [vmem:[#allocation2 + $0x8] sm:$0xff]
    %v1747 = vld [vmem:[#allocation2 + $0x10] sm:$0xff]
    %v1748 = vlaneseq
    %v1749 = vshrl.u32 %v1748, 7
    %v1750 = vsub.s32 1, %v1749
    %v1751 = vrot.slane %v1404, %v1750
    %v1752 = vmul.f32 %v1746, %v1751
    %v1753 = vmul.f32 %v1747, %v1751
    %v1754 = vadd.f32 %v1752, %v1417
    %v1755 = vadd.f32 %v1753, %v1417
    %v1756 = vld [vmem:[%s0] sm:$0xff]
    %v1757 = vld [vmem:[%s0 + $0x8] sm:$0xff]
    %v1758 = vlaneseq
    %v1759 = vshrl.u32 %v1758, 7
    %v1760 = vsub.s32 0, %v1759
    %v1761 = vrot.slane %v1743, %v1760
    %v1762 = vmul.f32 %v1754, %v1761
    %v1763 = vmul.f32 %v1755, %v1761
    %v1764 = vadd.f32 %v1756, %v1762
    %v1765 = vadd.f32 %v1757, %v1763
    %v1766 = vsub.f32 0.0, %v1764
    %v1767 = vsub.f32 0.0, %v1765
    %v1768 = vmul.f32 %v1766, 1.442695
    %v1769 = vpow.pop %v1768
    %v1770 = vmul.f32 %v1767, 1.442695
    %v1771 = vpow.pop %v1770
    %v1772 = vadd.f32 %v1769, 1.0
    %v1773 = vadd.f32 %v1771, 1.0
    %v1774 = vrcp.pop %v1772
    %v1775 = vrcp.pop %v1773
    %v1776 = vmul.f32 %v1764, %v1774
    %v1777 = vmul.f32 %v1765, %v1775
    %1778 = vst [vmem:[#allocation17] sm:$0xff] %v1776
    %1779 = vst [vmem:[#allocation17 + $0x8] sm:$0xff] %v1777
    %v1780 = vmul.f32 %v1276, 0.0625
    %v1781 = vmul.f32 %v1780, %v1404
    %v1782 = vadd.f32 %v1781, %v1417
    %v1783 = vld [vmem:[%s12] sm:$0xff]
    %v1784 = vld [vmem:[%s12 + $0x8] sm:$0xff]
    %v1785 = vld [vmem:[%s12 + $0x10] sm:$0xff]
    %v1786 = vld [vmem:[%s12 + $0x18] sm:$0xff]
    %v1787 = vld [vmem:[%s12 + $0x20] sm:$0xff]
    %v1788 = vld [vmem:[%s12 + $0x28] sm:$0xff]
    %v1789 = vld [vmem:[%s12 + $0x30] sm:$0xff]
    %v1790 = vld [vmem:[%s12 + $0x38] sm:$0xff]
    %v1791 = vld [vmem:[%s12 + $0x40] sm:$0xff]
    %v1792 = vld [vmem:[%s12 + $0x48] sm:$0xff]
    %v1793 = vld [vmem:[%s12 + $0x50] sm:$0xff]
    %v1794 = vld [vmem:[%s12 + $0x58] sm:$0xff]
    %v1795 = vld [vmem:[%s12 + $0x60] sm:$0xff]
    %v1796 = vld [vmem:[%s12 + $0x68] sm:$0xff]
    %v1797 = vld [vmem:[%s12 + $0x70] sm:$0xff]
    %v1798 = vld [vmem:[%s12 + $0x78] sm:$0xff]
    %v1800 = vrot.slane %v1782, 1
    %1802 = vmatprep.subr.mxu0 0.0
    %1803 = vmatpush1.msra.mxu0 %v1798
    %1804 = vmatprep.subr.mxu0 0.0
    %1805 = vmatpush1.msra.mxu0 %v1797
    %1806 = vmatprep.subr.mxu0 0.0
    %1807 = vmatpush1.msra.mxu0 %v1796
    %1808 = vmatprep.subr.mxu0 0.0
    %1809 = vmatpush1.msra.mxu0 %v1795
    %1810 = vmatprep.subr.mxu0 0.0
    %1811 = vmatpush1.msra.mxu0 %v1794
    %1812 = vmatprep.subr.mxu0 0.0
    %1813 = vmatpush1.msra.mxu0 %v1793
    %1814 = vmatprep.subr.mxu0 0.0
    %1815 = vmatpush1.msra.mxu0 %v1792
    %1816 = vmatprep.subr.mxu0 0.0
    %1817 = vmatpush1.msra.mxu0 %v1791
    %1818 = vmatprep.subr.mxu0 0.0
    %1819 = vmatpush1.msra.mxu0 %v1790
    %1820 = vmatprep.subr.mxu0 0.0
    %1821 = vmatpush1.msra.mxu0 %v1789
    %1822 = vmatprep.subr.mxu0 0.0
    %1823 = vmatpush1.msra.mxu0 %v1788
    %1824 = vmatprep.subr.mxu0 0.0
    %1825 = vmatpush1.msra.mxu0 %v1787
    %1826 = vmatprep.subr.mxu0 0.0
    %1827 = vmatpush1.msra.mxu0 %v1786
    %1828 = vmatprep.subr.mxu0 0.0
    %1829 = vmatpush1.msra.mxu0 %v1785
    %1830 = vmatprep.subr.mxu0 0.0
    %1831 = vmatpush1.msra.mxu0 %v1784
    %1832 = vmatprep.subr.mxu0 0.0
    %1833 = vmatpush1.msra.mxu0 %v1783
    %1834 = vmatprep.subr.mxu0 0.0
    %1835 = vmatpush2.msra.mxu0 0.0
    %1836 = vmatprep.subr.mxu0 0.0
    %1837 = vmatpush2.msra.mxu0 0.0
    %1838 = vmatprep.subr.mxu0 0.0
    %1839 = vmatpush2.msra.mxu0 0.0
    %1840 = vmatprep.subr.mxu0 0.0
    %1841 = vmatpush2.msra.mxu0 0.0
    %1842 = vmatprep.subr.mxu0 0.0
    %1843 = vmatpush2.msra.mxu0 0.0
    %1844 = vmatprep.subr.mxu0 0.0
    %1845 = vmatpush2.msra.mxu0 0.0
    %1846 = vmatprep.subr.mxu0 0.0
    %1847 = vmatpush2.msra.mxu0 0.0
    %1848 = vmatprep.subr.mxu0 0.0
    %1849 = vmatpush2.msra.mxu0 0.0
    %1850 = vmatprep.subr.mxu0 0.0
    %1851 = vmatpush2.msra.mxu0 0.0
    %1852 = vmatprep.subr.mxu0 0.0
    %1853 = vmatpush2.msra.mxu0 0.0
    %1854 = vmatprep.subr.mxu0 0.0
    %1855 = vmatpush2.msra.mxu0 0.0
    %1856 = vmatprep.subr.mxu0 0.0
    %1857 = vmatpush2.msra.mxu0 0.0
    %1858 = vmatprep.subr.mxu0 0.0
    %1859 = vmatpush2.msra.mxu0 0.0
    %1860 = vmatprep.subr.mxu0 0.0
    %1861 = vmatpush2.msra.mxu0 0.0
    %1862 = vmatprep.subr.mxu0 0.0
    %1863 = vmatpush2.msra.mxu0 0.0
    %1864 = vmatprep.subr.mxu0 0.0
    %1865 = vmatpush2.msra.mxu0 0.0
    %1866 = vmatprep.mubr.f32.mxu0 0.0
    %1867 = vmatmul.mubr.f32.gmra.mxu0 %v1800
    %v1868 = vpop.f32.mrf.mxu0
    %v1869 = vadd.f32 0.0, %v1868
    %v1870 = vpop.f32.mrf.mxu0
    %1871 = vdwg.mxu0
    %v1872 = vmul.f32 %v1869, 0.0625
    %v1873 = vld [vmem:[%s7] sm:$0xff]
    %v1874 = vld [vmem:[#allocation12] sm:$0x1]
    %v1876 = vsel %vm1512, %v1872, 0
    %1878 = vmatprep.subr.mxu0 0.0
    %1879 = vmatpush1.msra.mxu0 0.0
    %1880 = vmatprep.subr.mxu0 0.0
    %1881 = vmatpush1.msra.mxu0 0.0
    %1882 = vmatprep.subr.mxu0 0.0
    %1883 = vmatpush1.msra.mxu0 0.0
    %1884 = vmatprep.subr.mxu0 0.0
    %1885 = vmatpush1.msra.mxu0 0.0
    %1886 = vmatprep.subr.mxu0 0.0
    %1887 = vmatpush1.msra.mxu0 0.0
    %1888 = vmatprep.subr.mxu0 0.0
    %1889 = vmatpush1.msra.mxu0 0.0
    %1890 = vmatprep.subr.mxu0 0.0
    %1891 = vmatpush1.msra.mxu0 0.0
    %1892 = vmatprep.subr.mxu0 0.0
    %1893 = vmatpush1.msra.mxu0 0.0
    %1894 = vmatprep.subr.mxu0 0.0
    %1895 = vmatpush1.msra.mxu0 0.0
    %1896 = vmatprep.subr.mxu0 0.0
    %1897 = vmatpush1.msra.mxu0 0.0
    %1898 = vmatprep.subr.mxu0 0.0
    %1899 = vmatpush1.msra.mxu0 0.0
    %1900 = vmatprep.subr.mxu0 0.0
    %1901 = vmatpush1.msra.mxu0 0.0
    %1902 = vmatprep.subr.mxu0 0.0
    %1903 = vmatpush1.msra.mxu0 0.0
    %1904 = vmatprep.subr.mxu0 0.0
    %1905 = vmatpush1.msra.mxu0 0.0
    %1906 = vmatprep.subr.mxu0 0.0
    %1907 = vmatpush1.msra.mxu0 0.0
    %1908 = vmatprep.subr.mxu0 0.0
    %1909 = vmatpush1.msra.mxu0 %v1873
    %1910 = vmatprep.subr.mxu0 0.0
    %1911 = vmatpush2.msra.mxu0 0.0
    %1912 = vmatprep.subr.mxu0 0.0
    %1913 = vmatpush2.msra.mxu0 0.0
    %1914 = vmatprep.subr.mxu0 0.0
    %1915 = vmatpush2.msra.mxu0 0.0
    %1916 = vmatprep.subr.mxu0 0.0
    %1917 = vmatpush2.msra.mxu0 0.0
    %1918 = vmatprep.subr.mxu0 0.0
    %1919 = vmatpush2.msra.mxu0 0.0
    %1920 = vmatprep.subr.mxu0 0.0
    %1921 = vmatpush2.msra.mxu0 0.0
    %1922 = vmatprep.subr.mxu0 0.0
    %1923 = vmatpush2.msra.mxu0 0.0
    %1924 = vmatprep.subr.mxu0 0.0
    %1925 = vmatpush2.msra.mxu0 0.0
    %1926 = vmatprep.subr.mxu0 0.0
    %1927 = vmatpush2.msra.mxu0 0.0
    %1928 = vmatprep.subr.mxu0 0.0
    %1929 = vmatpush2.msra.mxu0 0.0
    %1930 = vmatprep.subr.mxu0 0.0
    %1931 = vmatpush2.msra.mxu0 0.0
    %1932 = vmatprep.subr.mxu0 0.0
    %1933 = vmatpush2.msra.mxu0 0.0
    %1934 = vmatprep.subr.mxu0 0.0
    %1935 = vmatpush2.msra.mxu0 0.0
    %1936 = vmatprep.subr.mxu0 0.0
    %1937 = vmatpush2.msra.mxu0 0.0
    %1938 = vmatprep.subr.mxu0 0.0
    %1939 = vmatpush2.msra.mxu0 0.0
    %1940 = vmatprep.subr.mxu0 0.0
    %1941 = vmatpush2.msra.mxu0 0.0
    %1942 = vmatprep.mubr.f32.mxu0 0.0
    %1943 = vmatmul.mubr.f32.gmra.mxu0 %v1876
    %v1944 = vpop.f32.mrf.mxu0
    %v1945 = vadd.f32 %v1874, %v1944
    %v1946 = vpop.f32.mrf.mxu0
    %1947 = vdwg.mxu0
    %v1948 = vmax.f32 %v1945, 0.0
    %v1949 = vld [vmem:[#allocation14] sm:$0x3]
    %v1950 = vld [vmem:[#allocation15] sm:$0x1]
    %v1952 = vsel %vm1589, %v1948, 0
    %v1955 = vsel %vm1593, %v1949, 0
    %1957 = vmatprep.subr.mxu0 0.0
    %1958 = vmatpush1.msra.mxu0 0.0
    %1959 = vmatprep.subr.mxu0 0.0
    %1960 = vmatpush1.msra.mxu0 0.0
    %1961 = vmatprep.subr.mxu0 0.0
    %1962 = vmatpush1.msra.mxu0 0.0
    %1963 = vmatprep.subr.mxu0 0.0
    %1964 = vmatpush1.msra.mxu0 0.0
    %1965 = vmatprep.subr.mxu0 0.0
    %1966 = vmatpush1.msra.mxu0 0.0
    %1967 = vmatprep.subr.mxu0 0.0
    %1968 = vmatpush1.msra.mxu0 0.0
    %1969 = vmatprep.subr.mxu0 0.0
    %1970 = vmatpush1.msra.mxu0 0.0
    %1971 = vmatprep.subr.mxu0 0.0
    %1972 = vmatpush1.msra.mxu0 0.0
    %1973 = vmatprep.subr.mxu0 0.0
    %1974 = vmatpush1.msra.mxu0 0.0
    %1975 = vmatprep.subr.mxu0 0.0
    %1976 = vmatpush1.msra.mxu0 0.0
    %1977 = vmatprep.subr.mxu0 0.0
    %1978 = vmatpush1.msra.mxu0 0.0
    %1979 = vmatprep.subr.mxu0 0.0
    %1980 = vmatpush1.msra.mxu0 0.0
    %1981 = vmatprep.subr.mxu0 0.0
    %1982 = vmatpush1.msra.mxu0 0.0
    %1983 = vmatprep.subr.mxu0 0.0
    %1984 = vmatpush1.msra.mxu0 0.0
    %1985 = vmatprep.subr.mxu0 0.0
    %1986 = vmatpush1.msra.mxu0 0.0
    %1987 = vmatprep.subr.mxu0 0.0
    %1988 = vmatpush1.msra.mxu0 %v1955
    %1989 = vmatprep.subr.mxu0 0.0
    %1990 = vmatpush2.msra.mxu0 0.0
    %1991 = vmatprep.subr.mxu0 0.0
    %1992 = vmatpush2.msra.mxu0 0.0
    %1993 = vmatprep.subr.mxu0 0.0
    %1994 = vmatpush2.msra.mxu0 0.0
    %1995 = vmatprep.subr.mxu0 0.0
    %1996 = vmatpush2.msra.mxu0 0.0
    %1997 = vmatprep.subr.mxu0 0.0
    %1998 = vmatpush2.msra.mxu0 0.0
    %1999 = vmatprep.subr.mxu0 0.0
    %2000 = vmatpush2.msra.mxu0 0.0
    %2001 = vmatprep.subr.mxu0 0.0
    %2002 = vmatpush2.msra.mxu0 0.0
    %2003 = vmatprep.subr.mxu0 0.0
    %2004 = vmatpush2.msra.mxu0 0.0
    %2005 = vmatprep.subr.mxu0 0.0
    %2006 = vmatpush2.msra.mxu0 0.0
    %2007 = vmatprep.subr.mxu0 0.0
    %2008 = vmatpush2.msra.mxu0 0.0
    %2009 = vmatprep.subr.mxu0 0.0
    %2010 = vmatpush2.msra.mxu0 0.0
    %2011 = vmatprep.subr.mxu0 0.0
    %2012 = vmatpush2.msra.mxu0 0.0
    %2013 = vmatprep.subr.mxu0 0.0
    %2014 = vmatpush2.msra.mxu0 0.0
    %2015 = vmatprep.subr.mxu0 0.0
    %2016 = vmatpush2.msra.mxu0 0.0
    %2017 = vmatprep.subr.mxu0 0.0
    %2018 = vmatpush2.msra.mxu0 0.0
    %2019 = vmatprep.subr.mxu0 0.0
    %2020 = vmatpush2.msra.mxu0 0.0
    %2021 = vmatprep.mubr.f32.mxu0 0.0
    %2022 = vmatmul.mubr.f32.gmra.mxu0 %v1952
    %v2023 = vpop.f32.mrf.mxu0
    %v2024 = vadd.f32 %v1950, %v2023
    %v2025 = vpop.f32.mrf.mxu0
    %2026 = vdwg.mxu0
    %v2027 = vsub.f32 0.0, %v2024
    %v2028 = vmul.f32 %v2027, 1.442695
    %v2029 = vpow.pop %v2028
    %v2030 = vadd.f32 %v2029, 1.0
    %v2031 = vrcp.pop %v2030
    %v2032 = vld [vmem:[%s13] sm:$0xff]
    %v2034 = vsel %vm1512, %v2031, 0
    %2036 = vmatprep.subr.mxu0 0.0
    %2037 = vmatpush1.msra.mxu0 0.0
    %2038 = vmatprep.subr.mxu0 0.0
    %2039 = vmatpush1.msra.mxu0 0.0
    %2040 = vmatprep.subr.mxu0 0.0
    %2041 = vmatpush1.msra.mxu0 0.0
    %2042 = vmatprep.subr.mxu0 0.0
    %2043 = vmatpush1.msra.mxu0 0.0
    %2044 = vmatprep.subr.mxu0 0.0
    %2045 = vmatpush1.msra.mxu0 0.0
    %2046 = vmatprep.subr.mxu0 0.0
    %2047 = vmatpush1.msra.mxu0 0.0
    %2048 = vmatprep.subr.mxu0 0.0
    %2049 = vmatpush1.msra.mxu0 0.0
    %2050 = vmatprep.subr.mxu0 0.0
    %2051 = vmatpush1.msra.mxu0 0.0
    %2052 = vmatprep.subr.mxu0 0.0
    %2053 = vmatpush1.msra.mxu0 0.0
    %2054 = vmatprep.subr.mxu0 0.0
    %2055 = vmatpush1.msra.mxu0 0.0
    %2056 = vmatprep.subr.mxu0 0.0
    %2057 = vmatpush1.msra.mxu0 0.0
    %2058 = vmatprep.subr.mxu0 0.0
    %2059 = vmatpush1.msra.mxu0 0.0
    %2060 = vmatprep.subr.mxu0 0.0
    %2061 = vmatpush1.msra.mxu0 0.0
    %2062 = vmatprep.subr.mxu0 0.0
    %2063 = vmatpush1.msra.mxu0 0.0
    %2064 = vmatprep.subr.mxu0 0.0
    %2065 = vmatpush1.msra.mxu0 0.0
    %2066 = vmatprep.subr.mxu0 0.0
    %2067 = vmatpush1.msra.mxu0 %v2032
    %2068 = vmatprep.subr.mxu0 0.0
    %2069 = vmatpush2.msra.mxu0 0.0
    %2070 = vmatprep.subr.mxu0 0.0
    %2071 = vmatpush2.msra.mxu0 0.0
    %2072 = vmatprep.subr.mxu0 0.0
    %2073 = vmatpush2.msra.mxu0 0.0
    %2074 = vmatprep.subr.mxu0 0.0
    %2075 = vmatpush2.msra.mxu0 0.0
    %2076 = vmatprep.subr.mxu0 0.0
    %2077 = vmatpush2.msra.mxu0 0.0
    %2078 = vmatprep.subr.mxu0 0.0
    %2079 = vmatpush2.msra.mxu0 0.0
    %2080 = vmatprep.subr.mxu0 0.0
    %2081 = vmatpush2.msra.mxu0 0.0
    %2082 = vmatprep.subr.mxu0 0.0
    %2083 = vmatpush2.msra.mxu0 0.0
    %2084 = vmatprep.subr.mxu0 0.0
    %2085 = vmatpush2.msra.mxu0 0.0
    %2086 = vmatprep.subr.mxu0 0.0
    %2087 = vmatpush2.msra.mxu0 0.0
    %2088 = vmatprep.subr.mxu0 0.0
    %2089 = vmatpush2.msra.mxu0 0.0
    %2090 = vmatprep.subr.mxu0 0.0
    %2091 = vmatpush2.msra.mxu0 0.0
    %2092 = vmatprep.subr.mxu0 0.0
    %2093 = vmatpush2.msra.mxu0 0.0
    %2094 = vmatprep.subr.mxu0 0.0
    %2095 = vmatpush2.msra.mxu0 0.0
    %2096 = vmatprep.subr.mxu0 0.0
    %2097 = vmatpush2.msra.mxu0 0.0
    %2098 = vmatprep.subr.mxu0 0.0
    %2099 = vmatpush2.msra.mxu0 0.0
    %2100 = vmatprep.mubr.f32.mxu0 0.0
    %2101 = vmatmul.mubr.f32.gmra.mxu0 %v2034
    %v2102 = vpop.f32.mrf.mxu0
    %v2103 = vadd.f32 0.0, %v2102
    %v2104 = vpop.f32.mrf.mxu0
    %2105 = vdwg.mxu0
    %v2106 = vld [vmem:[#allocation2 + $0x20] sm:$0xff]
    %v2107 = vld [vmem:[#allocation2 + $0x28] sm:$0xff]
    %v2108 = vmul.f32 %v2106, %v1751
    %v2109 = vmul.f32 %v2107, %v1751
    %v2110 = vadd.f32 %v2108, %v1417
    %v2111 = vadd.f32 %v2109, %v1417
    %v2112 = vld [vmem:[%s0 + $0x10] sm:$0xff]
    %v2113 = vld [vmem:[%s0 + $0x18] sm:$0xff]
    %v2114 = vlaneseq
    %v2115 = vshrl.u32 %v2114, 7
    %v2116 = vsub.s32 0, %v2115
    %v2117 = vrot.slane %v2103, %v2116
    %v2118 = vmul.f32 %v2110, %v2117
    %v2119 = vmul.f32 %v2111, %v2117
    %v2120 = vadd.f32 %v2112, %v2118
    %v2121 = vadd.f32 %v2113, %v2119
    %v2122 = vsub.f32 0.0, %v2120
    %v2123 = vsub.f32 0.0, %v2121
    %v2124 = vmul.f32 %v2122, 1.442695
    %v2125 = vpow.pop %v2124
    %v2126 = vmul.f32 %v2123, 1.442695
    %v2127 = vpow.pop %v2126
    %v2128 = vadd.f32 %v2125, 1.0
    %v2129 = vadd.f32 %v2127, 1.0
    %v2130 = vrcp.pop %v2128
    %v2131 = vrcp.pop %v2129
    %v2132 = vmul.f32 %v2120, %v2130
    %v2133 = vmul.f32 %v2121, %v2131
    %2134 = vst [vmem:[#allocation17 + $0x10] sm:$0xff] %v2132
    %2135 = vst [vmem:[#allocation17 + $0x18] sm:$0xff] %v2133
    // Predicated region
    $region90: #{tpu_custom_call.1} parent=1 // pred_check
      _
    $region91: #{tpu_custom_call.1} parent=1 // pred_check_branch
      %2137 = sbr.rel (0) target = $region93
    $region92: #{tpu_custom_call.1} parent=1 // pred_region
      %s2139 = ssub.s32 512, 512
      %2140 = vsyncadd [#allocation5], %s2139
      %s2141 = sshll.u32 [#allocation17], 4
      %s2142 = int_to_ptr.vmem [resolvable:$true] %s2141
      %2147 = dma.vmem_to_hbm [thread:$0]  %s2142, 512, %s14, [#allocation5], 128, 128, 8
    $region93: #{tpu_custom_call.1} parent=1 // pred_fallthru
      _
    // Predicated region
    $region94: #{tpu_custom_call.1} parent=1 // pred_check
      _
    $region95: #{tpu_custom_call.1} parent=1 // pred_check_branch
      %2149 = sbr.rel (0) target = $region97
    $region96: #{tpu_custom_call.1} parent=1 // pred_region
      %2150 = dma.done [#allocation5], 512
    $region97: #{tpu_custom_call.1} parent=1 // pred_fallthru
      _
    %2151 = vsyncpa [#allocation4], 1
    %2152 = vsyncpa [#allocation7], 1
    %2153 = vsyncpa [#allocation10], 1
    %2154 = vsyncpa [#allocation13], 1
    %2155 = vsyncpa [#allocation16], 1
    %2156 = vsyncpa [#allocation5], 1

</llo_original>
